<compile_context>
chip_gen: v7x
topology: tpu7x:2x2x1
jax: 0.10.0
libtpu: 0.0.40
codegen_flags: <defaults>
</compile_context>

<pallas_src>
import functools

import jax
import jax.numpy as jnp
from jax.experimental import pallas as pl
from jax.experimental.pallas import tpu as pltpu


def node2edge_kernel(matrix_ref, nec_ref, ew_ref, x_ref,
                     w1_ref, b1_ref, w2_ref, b2_ref,
                     out_ref, *, neg_slope):
    # Per-tile refs (tile covers BT whole batches):
    #   matrix_ref : [BT, E, N]
    #   nec_ref    : [BT*E*N, 2C]   (pre-flattened in the wrapper)
    #   ew_ref     : [BT, E, 1]
    #   x_ref      : [BT, N, C]
    #   w1_ref     : [2C, H]   b1_ref : [1, H]
    #   w2_ref     : [1, H]    b2_ref : [1, 1]
    #   out_ref    : [BT, E, C]
    BT, E, N = matrix_ref.shape

    # --- attention MLP on all BT*E*N rows at once (folded batch) ---
    # f32 operands take Mosaic's multi-pass (accurate) MXU path.
    # TODO(synk): if this ever becomes MXU-bound at production C/H, cast the
    # dot inputs to bf16 (keep f32 accumulation) and tile K/H toward 128/256.
    h = jnp.dot(nec_ref[...], w1_ref[...],
                preferred_element_type=jnp.float32) + b1_ref[...]
    # LeakyReLU with Node2Edge's default atten_neg_slope=0.1
    # (note: nn.LeakyReLU's own default would be 0.01).
    h = jnp.where(h > 0, h, neg_slope * h)
    # TODO(synk): nn.Dropout(0.2) is stochastic in training mode; eval-mode
    # identity here (kernel is not usable for training-mode parity).

    # Width-1 second Linear as a lane reduction (VPU mul + XLU reduce) instead
    # of an MXU matmul with output width 1.
    att = jnp.sum(h * w2_ref[...], axis=-1, keepdims=True) + b2_ref[...]  # [M, 1]
    # [M,1] -> [BT,E,N] puts N back on the lane axis for the softmax.  This
    # relayout touches the SMALLEST tensor in the chain (B*E*N elements); any
    # alternative would transpose nec (2C x larger) or h (H x larger) instead.
    # TODO(synk): at production B*E*N, confirm via pl.lower_as_mlir that Mosaic
    # lowers this to XLU moves rather than a VMEM round-trip; if not, stage
    # through a [BT*E, N] VMEM scratch.
    att = att.reshape(BT, E, N)

    # --- weight by adjacency matrix, softmax over node axis (dim=2) ---
    hw = att * matrix_ref[...]
    m = jnp.max(hw, axis=-1, keepdims=True)
    p = jnp.exp(hw - m)
    # Exact reciprocal: the denominator is only [BT*E, 1] of work, so the EUP
    # approximate path buys no wall-clock here and costs ~1e-3 of parity.
    hs = p / jnp.sum(p, axis=-1, keepdims=True)

    # --- aggregate node features (batched matmul) and scale by edge weights ---
    edges_h = jnp.einsum("ben,bnc->bec", hs, x_ref[...],
                         preferred_element_type=jnp.float32)  # [BT, E, C]
    # TODO(synk): with C=4 this is a 4/128-lane masked store (worst on v5e's
    # single vst slot).  Once E*C reaches a multiple of 128 (or E >> C), present
    # a lane-dense slab instead — store (BT, E*C) or the transposed product with
    # E minor — and reshape/transpose back for free in the wrapper.
    out_ref[...] = (ew_ref[...] * edges_h).astype(out_ref.dtype)


def _num_tensorcores() -> int:
    """TensorCores per chip: 2 on v7x, 1 on v5e/v6e (conservative fallback: 1)."""
    try:
        kind = (getattr(jax.devices()[0], "device_kind", "") or "").lower()
    except Exception:
        return 1
    if "v7" in kind or "7x" in kind:
        return 2
    return 1


def node2edge(matrix, node_edge_cat, edge_weights, x, w1, b1, w2, b2,
              *, neg_slope=0.1):
    B, E, N, twoC = node_edge_cat.shape
    C = x.shape[-1]
    H = w1.shape[-1]

    # Grid = batch-tiles.  Split 2-way ONLY when:
    #   (a) the chip has 2 TensorCores (v7x) so the "parallel" axis can actually
    #       be core-sharded — on 1-TC v5e/v6e grid=(2,) is a serial loop that
    #       doubles the ~0.35 us per-step fixed cost and halves the MLP matmul M;
    #   (b) B is even;
    #   (c) per-tile work is large enough to exceed the per-step overhead.
    # TODO(synk): on v7x, verify in an xprof trace that the "parallel" axis
    # lands on both TensorCores; if not, switch to pltpu.CORE_PARALLEL / a
    # pl.core_map split with the leading axis sized to the core count.
    rows = B * E * N
    num_tiles = 2 if (_num_tensorcores() >= 2 and B % 2 == 0
                      and rows // 2 >= 2048) else 1
    BT = B // num_tiles

    # Layout plumbing in XLA (free views on the HBM layout), not in the kernel:
    nec_flat = node_edge_cat.reshape(B * E * N, twoC)   # rows ordered (b, e, n)
    ew3 = edge_weights.reshape(B, E, 1)
    b1_2d = b1.reshape(1, H)
    w2_row = w2.reshape(1, H)                           # width-1 Linear -> lane reduce
    b2_2d = b2.reshape(1, 1)

    # TODO(synk): at production E/N/B, budget VMEM against v7x's 64 MiB (32 MiB
    # scoped default), not v5e/v6e's 128 MiB: the double-buffered nec slab is
    # 2*BT*E*N*2C*4 bytes.  Shrink BT / add an E grid axis accordingly, raise
    # vmem_limit_bytes in CompilerParams, and mark the constant-index weight
    # specs (W1/b1/W2/b2) pipeline_mode=pl.Buffered(1) so they are not
    # double-buffered.  Full-slab blocks are fine at these tiny shapes.

    kernel = functools.partial(node2edge_kernel, neg_slope=neg_slope)

    return pl.pallas_call(
        kernel,
        out_shape=jax.ShapeDtypeStruct((B, E, C), jnp.float32),
        grid_spec=pltpu.PrefetchScalarGridSpec(
            num_scalar_prefetch=0,
            grid=(num_tiles,),
            in_specs=[
                pl.BlockSpec((BT, E, N), lambda t: (t, 0, 0)),        # matrix
                pl.BlockSpec((BT * E * N, twoC), lambda t: (t, 0)),   # node_edge_cat (flat)
                pl.BlockSpec((BT, E, 1), lambda t: (t, 0, 0)),        # edge_weights
                pl.BlockSpec((BT, N, C), lambda t: (t, 0, 0)),        # x
                pl.BlockSpec((twoC, H), lambda t: (0, 0)),            # W1
                pl.BlockSpec((1, H), lambda t: (0, 0)),               # b1
                pl.BlockSpec((1, H), lambda t: (0, 0)),               # W2 (as row)
                pl.BlockSpec((1, 1), lambda t: (0, 0)),               # b2
            ],
            out_specs=pl.BlockSpec((BT, E, C), lambda t: (t, 0, 0)),
        ),
        compiler_params=pltpu.CompilerParams(
            dimension_semantics=("parallel",)),
    )(matrix, nec_flat, ew3, x, w1, b1_2d, w2_row, b2_2d)


def node2edge_ref(matrix, node_edge_cat, edge_weights, x, w1, b1, w2, b2,
                  *, neg_slope=0.1):
    """Pure-JAX reference mirroring the PyTorch forward (eval mode).

    Matmuls run at HIGHEST precision so the reference is exact f32 and the
    kernel can be checked at 1e-5.
    """
    hi = jax.lax.Precision.HIGHEST
    h = jnp.einsum("benc,ch->benh", node_edge_cat, w1, precision=hi) + b1
    h = jnp.where(h > 0, h, neg_slope * h)
    att = (jnp.einsum("benh,ho->beno", h, w2, precision=hi) + b2)[..., 0]
    hw = att * matrix
    hs = jax.nn.softmax(hw, axis=2)
    edges_h = jnp.einsum("ben,bnc->bec", hs, x, precision=hi)
    return edge_weights[..., None] * edges_h


if __name__ == "__main__":
    # Small shapes: batch=2, edges=8, nodes=16, out_channels=4, hidden=32
    B, E, N, C, H = 2, 8, 16, 4, 32
    key = jax.random.PRNGKey(0)
    k1, k2, k3, k4, k5, k6, k7, k8 = jax.random.split(key, 8)

    matrix = (jax.random.uniform(k1, (B, E, N)) > 0.5).astype(jnp.float32)
    node_edge_cat = jax.random.normal(k2, (B, E, N, 2 * C), dtype=jnp.float32)
    edge_weights = jax.random.normal(k3, (B, E), dtype=jnp.float32)
    x = jax.random.normal(k4, (B, N, C), dtype=jnp.float32)

    # nn.Linear-like parameter shapes: W1[2C,H], b1[H], W2[H,1], b2[1]
    w1 = 0.1 * jax.random.normal(k5, (2 * C, H), dtype=jnp.float32)
    b1 = 0.1 * jax.random.normal(k6, (H,), dtype=jnp.float32)
    w2 = 0.1 * jax.random.normal(k7, (H, 1), dtype=jnp.float32)
    b2 = 0.1 * jax.random.normal(k8, (1,), dtype=jnp.float32)

    out = node2edge(matrix, node_edge_cat, edge_weights, x, w1, b1, w2, b2)
    out = jax.block_until_ready(out)

    ref = node2edge_ref(matrix, node_edge_cat, edge_weights, x, w1, b1, w2, b2)
    assert out.shape == (B, E, C)
    # Exact softmax denominator (no approx reciprocal) restores tight parity.
    assert jnp.allclose(out, ref, atol=1e-5, rtol=1e-5), "mismatch vs reference"

    print("KERNEL_OK")
</pallas_src>

<mosaic_0001>
module attributes {stable_mosaic.version = 11 : i64} {
  func.func @node2edge_kernel(%arg0: i32, %arg1: memref<2x8x16xf32, #tpu.memory_space<vmem>>, %arg2: memref<256x8xf32, #tpu.memory_space<vmem>>, %arg3: memref<2x8x1xf32, #tpu.memory_space<vmem>>, %arg4: memref<2x16x4xf32, #tpu.memory_space<vmem>>, %arg5: memref<8x32xf32, #tpu.memory_space<vmem>>, %arg6: memref<1x32xf32, #tpu.memory_space<vmem>>, %arg7: memref<1x32xf32, #tpu.memory_space<vmem>>, %arg8: memref<1x1xf32, #tpu.memory_space<vmem>>, %arg9: memref<2x8x4xf32, #tpu.memory_space<vmem>>) attributes {dimension_semantics = [#tpu.dimension_semantics<parallel>], iteration_bounds = array<i64: 1>, scalar_prefetch = 0 : i64, scratch_operands = 0 : i64, tpu.core_type = #tpu.core_type<tc>, window_params = [{transform_indices = @transform_0, window_bounds = array<i64: 2, 8, 16>}, {transform_indices = @transform_1, window_bounds = array<i64: 256, 8>}, {transform_indices = @transform_2, window_bounds = array<i64: 2, 8, 1>}, {transform_indices = @transform_3, window_bounds = array<i64: 2, 16, 4>}, {pipeline_mode = #tpu.pipeline_mode<synchronous>, transform_indices = @transform_4, window_bounds = array<i64: 8, 32>}, {pipeline_mode = #tpu.pipeline_mode<synchronous>, transform_indices = @transform_5, window_bounds = array<i64: 1, 32>}, {pipeline_mode = #tpu.pipeline_mode<synchronous>, transform_indices = @transform_6, window_bounds = array<i64: 1, 32>}, {pipeline_mode = #tpu.pipeline_mode<synchronous>, transform_indices = @transform_7, window_bounds = array<i64: 1, 1>}, {transform_indices = @transform_8, window_bounds = array<i64: 2, 8, 4>}]} {
    %c0 = arith.constant 0 : index
    %c0_0 = arith.constant 0 : index
    %0 = vector.load %arg2[%c0, %c0_0] : memref<256x8xf32, #tpu.memory_space<vmem>>, vector<256x8xf32>
    %c0_1 = arith.constant 0 : index
    %c0_2 = arith.constant 0 : index
    %1 = vector.load %arg5[%c0_1, %c0_2] : memref<8x32xf32, #tpu.memory_space<vmem>>, vector<8x32xf32>
    %cst = arith.constant dense<0.000000e+00> : vector<256x32xf32>
    %2 = tpu.matmul %0, %1, %cst {dimension_numbers = #tpu.dot_dimension_numbers<[1], [0], [0], [1], [0, 0, 1, 1], [], []>} : vector<256x8xf32>, vector<8x32xf32>, vector<256x32xf32> -> vector<256x32xf32>
    %c0_3 = arith.constant 0 : index
    %c0_4 = arith.constant 0 : index
    %3 = vector.load %arg6[%c0_3, %c0_4] : memref<1x32xf32, #tpu.memory_space<vmem>>, vector<1x32xf32>
    %4 = vector.broadcast %3 : vector<1x32xf32> to vector<256x32xf32>
    %5 = arith.addf %2, %4 : vector<256x32xf32>
    %cst_5 = arith.constant 0.000000e+00 : f32
    %6 = vector.broadcast %cst_5 : f32 to vector<256x32xf32>
    %7 = arith.cmpf ogt, %5, %6 : vector<256x32xf32>
    %cst_6 = arith.constant 1.000000e-01 : f32
    %8 = vector.broadcast %cst_6 : f32 to vector<256x32xf32>
    %9 = arith.mulf %8, %5 : vector<256x32xf32>
    %10 = arith.select %7, %5, %9 : vector<256x32xi1>, vector<256x32xf32>
    %c0_7 = arith.constant 0 : index
    %c0_8 = arith.constant 0 : index
    %11 = vector.load %arg7[%c0_7, %c0_8] : memref<1x32xf32, #tpu.memory_space<vmem>>, vector<1x32xf32>
    %12 = vector.broadcast %11 : vector<1x32xf32> to vector<256x32xf32>
    %13 = arith.mulf %10, %12 : vector<256x32xf32>
    %cst_9 = arith.constant dense<0.000000e+00> : vector<256xf32>
    %14 = vector.multi_reduction <add>, %13, %cst_9 [1] : vector<256x32xf32> to vector<256xf32>
    %15 = vector.shape_cast %14 : vector<256xf32> to vector<256x1xf32>
    %c0_10 = arith.constant 0 : index
    %c0_11 = arith.constant 0 : index
    %16 = vector.load %arg8[%c0_10, %c0_11] : memref<1x1xf32, #tpu.memory_space<vmem>>, vector<1x1xf32>
    %17 = vector.broadcast %16 : vector<1x1xf32> to vector<256x1xf32>
    %18 = arith.addf %15, %17 : vector<256x1xf32>
    %19 = vector.shape_cast %18 : vector<256x1xf32> to vector<2x8x16xf32>
    %c0_12 = arith.constant 0 : index
    %c0_13 = arith.constant 0 : index
    %c0_14 = arith.constant 0 : index
    %20 = vector.load %arg1[%c0_12, %c0_13, %c0_14] : memref<2x8x16xf32, #tpu.memory_space<vmem>>, vector<2x8x16xf32>
    %21 = arith.mulf %19, %20 : vector<2x8x16xf32>
    %cst_15 = arith.constant dense<0xFF800000> : vector<2x8xf32>
    %22 = vector.multi_reduction <maximumf>, %21, %cst_15 [2] : vector<2x8x16xf32> to vector<2x8xf32>
    %23 = vector.shape_cast %22 : vector<2x8xf32> to vector<2x8x1xf32>
    %24 = vector.broadcast %23 : vector<2x8x1xf32> to vector<2x8x16xf32>
    %25 = arith.subf %21, %24 : vector<2x8x16xf32>
    %26 = math.exp %25 : vector<2x8x16xf32>
    %cst_16 = arith.constant dense<0.000000e+00> : vector<2x8xf32>
    %27 = vector.multi_reduction <add>, %26, %cst_16 [2] : vector<2x8x16xf32> to vector<2x8xf32>
    %28 = vector.shape_cast %27 : vector<2x8xf32> to vector<2x8x1xf32>
    %29 = vector.broadcast %28 : vector<2x8x1xf32> to vector<2x8x16xf32>
    %30 = arith.divf %26, %29 : vector<2x8x16xf32>
    %c0_17 = arith.constant 0 : index
    %c0_18 = arith.constant 0 : index
    %c0_19 = arith.constant 0 : index
    %31 = vector.load %arg4[%c0_17, %c0_18, %c0_19] : memref<2x16x4xf32, #tpu.memory_space<vmem>>, vector<2x16x4xf32>
    "tpu.trace_start"() <{level = 10 : i32, message = "ben,bnc->bec"}> : () -> ()
    %cst_20 = arith.constant dense<0.000000e+00> : vector<2x8x4xf32>
    %32 = tpu.matmul %30, %31, %cst_20 {dimension_numbers = #tpu.dot_dimension_numbers<[2], [1], [1], [2], [0, 0, 0, 1, 1, 2], [0], [0]>} : vector<2x8x16xf32>, vector<2x16x4xf32>, vector<2x8x4xf32> -> vector<2x8x4xf32>
    "tpu.trace_stop"() : () -> ()
    %c0_21 = arith.constant 0 : index
    %c0_22 = arith.constant 0 : index
    %c0_23 = arith.constant 0 : index
    %33 = vector.load %arg3[%c0_21, %c0_22, %c0_23] : memref<2x8x1xf32, #tpu.memory_space<vmem>>, vector<2x8x1xf32>
    %34 = vector.broadcast %33 : vector<2x8x1xf32> to vector<2x8x4xf32>
    %35 = arith.mulf %34, %32 : vector<2x8x4xf32>
    %c0_24 = arith.constant 0 : index
    %c0_25 = arith.constant 0 : index
    %c0_26 = arith.constant 0 : index
    %36 = vector.load %arg9[%c0_24, %c0_25, %c0_26] : memref<2x8x4xf32, #tpu.memory_space<vmem>>, vector<2x8x4xf32>
    tpu.vector_store %arg9[%c0_24, %c0_25, %c0_26], %35 {strides = array<i32>} : memref<2x8x4xf32, #tpu.memory_space<vmem>>, vector<2x8x4xf32>,
    return
  }
  func.func @transform_0(%arg0: i32) -> (i32, i32, i32) {
    %c0_i32 = arith.constant 0 : i32
    %c0_i32_0 = arith.constant 0 : i32
    %c0_i32_1 = arith.constant 0 : i32
    return %arg0, %c0_i32, %c0_i32_0 : i32, i32, i32
  }
  func.func @transform_1(%arg0: i32) -> (i32, i32) {
    %c0_i32 = arith.constant 0 : i32
    %c0_i32_0 = arith.constant 0 : i32
    return %arg0, %c0_i32 : i32, i32
  }
  func.func @transform_2(%arg0: i32) -> (i32, i32, i32) {
    %c0_i32 = arith.constant 0 : i32
    %c0_i32_0 = arith.constant 0 : i32
    %c0_i32_1 = arith.constant 0 : i32
    return %arg0, %c0_i32, %c0_i32_0 : i32, i32, i32
  }
  func.func @transform_3(%arg0: i32) -> (i32, i32, i32) {
    %c0_i32 = arith.constant 0 : i32
    %c0_i32_0 = arith.constant 0 : i32
    %c0_i32_1 = arith.constant 0 : i32
    return %arg0, %c0_i32, %c0_i32_0 : i32, i32, i32
  }
  func.func @transform_4(%arg0: i32) -> (i32, i32) {
    %c0_i32 = arith.constant 0 : i32
    %c0_i32_0 = arith.constant 0 : i32
    %c0_i32_1 = arith.constant 0 : i32
    return %c0_i32, %c0_i32_0 : i32, i32
  }
  func.func @transform_5(%arg0: i32) -> (i32, i32) {
    %c0_i32 = arith.constant 0 : i32
    %c0_i32_0 = arith.constant 0 : i32
    %c0_i32_1 = arith.constant 0 : i32
    return %c0_i32, %c0_i32_0 : i32, i32
  }
  func.func @transform_6(%arg0: i32) -> (i32, i32) {
    %c0_i32 = arith.constant 0 : i32
    %c0_i32_0 = arith.constant 0 : i32
    %c0_i32_1 = arith.constant 0 : i32
    return %c0_i32, %c0_i32_0 : i32, i32
  }
  func.func @transform_7(%arg0: i32) -> (i32, i32) {
    %c0_i32 = arith.constant 0 : i32
    %c0_i32_0 = arith.constant 0 : i32
    %c0_i32_1 = arith.constant 0 : i32
    return %c0_i32, %c0_i32_0 : i32, i32
  }
  func.func @transform_8(%arg0: i32) -> (i32, i32, i32) {
    %c0_i32 = arith.constant 0 : i32
    %c0_i32_0 = arith.constant 0 : i32
    %c0_i32_1 = arith.constant 0 : i32
    return %arg0, %c0_i32, %c0_i32_0 : i32, i32, i32
  }
}

</mosaic_0001>

<llo_original>
// kernel: tpu_custom_call.1
$region0: #{tpu_custom_call.1}
  #allocation0 [shape = 'u32[]', space=smem, size = 0x4, offset = 0x4, fixed_abs, tag = 'smem constant byte address 0x4 - core index']
  #allocation1 [shape = 'u32[144,128]{1,0:T(1,128)}', space=vmem, size = 0x12000, scoped, tag = 'internal scratch']
  #allocation2 [shape = 'f32[1,1]{1,0:T(1,128)S(1)}', space=vmem, size = 0x200, scoped, tag = 'scoped memory for tpu_custom_call.1']
  %s0 = inlined_call_operand.vmem [shape: f32[2,8,16], index: 0, kind: input, shape index: {}]
  %s1 = inlined_call_operand.vmem [shape: f32[256,8], index: 1, kind: input, shape index: {}]
  %s2 = inlined_call_operand.vmem [shape: f32[2,8,1], index: 2, kind: input, shape index: {}]
  %s3 = inlined_call_operand.vmem [shape: f32[2,16,4], index: 3, kind: input, shape index: {}]
  %s4 = inlined_call_operand.vmem [shape: f32[8,32], index: 4, kind: input, shape index: {}]
  %s5 = inlined_call_operand.vmem [shape: f32[1,32], index: 5, kind: input, shape index: {}]
  %s6 = inlined_call_operand.vmem [shape: f32[1,32], index: 6, kind: input, shape index: {}]
  %s7 = inlined_call_operand.<no memory space> [shape: f32[1,1], index: 7, kind: input, shape index: {}]
  %s8 = inlined_call_operand.vmem [shape: f32[2,8,4], index: 8, kind: output, shape index: {}]
  %s9 = sld [smem:[#allocation0]]
  $region42: #{tpu_custom_call.1} parent=0
    _
  %s11 = ssub.s32 1, %s9
  %s12 = scalar_select 0, %s11, %s9
  %v13 = vstv %s7
  %14 = vst [vmem:[#allocation2] sm:$0x1] %v13
  // Predicated region
  $region2: #{tpu_custom_call.1} parent=0 // pred_check
    _
  $region3: #{tpu_custom_call.1} parent=0 // pred_check_branch
    %16 = sbr.rel (0) target = $region5
  $region4: #{tpu_custom_call.1} parent=0 // pred_region
    _
  $region5: #{tpu_custom_call.1} parent=0 // pred_fallthru
    _
  // Predicated region
  $region6: #{tpu_custom_call.1} parent=0 // pred_check
    _
  $region7: #{tpu_custom_call.1} parent=0 // pred_check_branch
    %18 = sbr.rel (0) target = $region9
  $region8: #{tpu_custom_call.1} parent=0 // pred_region
    _
  $region9: #{tpu_custom_call.1} parent=0 // pred_fallthru
    _
  // Predicated region
  $region10: #{tpu_custom_call.1} parent=0 // pred_check
    _
  $region11: #{tpu_custom_call.1} parent=0 // pred_check_branch
    %20 = sbr.rel (0) target = $region13
  $region12: #{tpu_custom_call.1} parent=0 // pred_region
    _
  $region13: #{tpu_custom_call.1} parent=0 // pred_fallthru
    _
  // Predicated region
  $region14: #{tpu_custom_call.1} parent=0 // pred_check
    _
  $region15: #{tpu_custom_call.1} parent=0 // pred_check_branch
    %22 = sbr.rel (0) target = $region17
  $region16: #{tpu_custom_call.1} parent=0 // pred_region
    _
  $region17: #{tpu_custom_call.1} parent=0 // pred_fallthru
    _
  // Predicated region
  $region18: #{tpu_custom_call.1} parent=0 // pred_check
    _
  $region19: #{tpu_custom_call.1} parent=0 // pred_check_branch
    %24 = sbr.rel (0) target = $region21
  $region20: #{tpu_custom_call.1} parent=0 // pred_region
    _
  $region21: #{tpu_custom_call.1} parent=0 // pred_fallthru
    _
  // Predicated region
  $region22: #{tpu_custom_call.1} parent=0 // pred_check
    _
  $region23: #{tpu_custom_call.1} parent=0 // pred_check_branch
    %26 = sbr.rel (0) target = $region25
  $region24: #{tpu_custom_call.1} parent=0 // pred_region
    _
  $region25: #{tpu_custom_call.1} parent=0 // pred_fallthru
    _
  // Predicated region
  $region26: #{tpu_custom_call.1} parent=0 // pred_check
    _
  $region27: #{tpu_custom_call.1} parent=0 // pred_check_branch
    %28 = sbr.rel (0) target = $region29
  $region28: #{tpu_custom_call.1} parent=0 // pred_region
    _
  $region29: #{tpu_custom_call.1} parent=0 // pred_fallthru
    _
  // Predicated region
  $region30: #{tpu_custom_call.1} parent=0 // pred_check
    _
  $region31: #{tpu_custom_call.1} parent=0 // pred_check_branch
    %30 = sbr.rel (0) target = $region33
  $region32: #{tpu_custom_call.1} parent=0 // pred_region
    _
  $region33: #{tpu_custom_call.1} parent=0 // pred_fallthru
    _
  %v31 = vld [vmem:[%s1] sm:$0xff]
  %v32 = vld [vmem:[%s1 + $0x8] sm:$0xff]
  %v33 = vld [vmem:[%s1 + $0x10] sm:$0xff]
  %v34 = vld [vmem:[%s1 + $0x18] sm:$0xff]
  %v35 = vld [vmem:[%s1 + $0x20] sm:$0xff]
  %v36 = vld [vmem:[%s1 + $0x28] sm:$0xff]
  %v37 = vld [vmem:[%s1 + $0x30] sm:$0xff]
  %v38 = vld [vmem:[%s1 + $0x38] sm:$0xff]
  %v39 = vld [vmem:[%s1 + $0x40] sm:$0xff]
  %v40 = vld [vmem:[%s1 + $0x48] sm:$0xff]
  %v41 = vld [vmem:[%s1 + $0x50] sm:$0xff]
  %v42 = vld [vmem:[%s1 + $0x58] sm:$0xff]
  %v43 = vld [vmem:[%s1 + $0x60] sm:$0xff]
  %v44 = vld [vmem:[%s1 + $0x68] sm:$0xff]
  %v45 = vld [vmem:[%s1 + $0x70] sm:$0xff]
  %v46 = vld [vmem:[%s1 + $0x78] sm:$0xff]
  %v47 = vld [vmem:[%s1 + $0x80] sm:$0xff]
  %v48 = vld [vmem:[%s1 + $0x88] sm:$0xff]
  %v49 = vld [vmem:[%s1 + $0x90] sm:$0xff]
  %v50 = vld [vmem:[%s1 + $0x98] sm:$0xff]
  %v51 = vld [vmem:[%s1 + $0xa0] sm:$0xff]
  %v52 = vld [vmem:[%s1 + $0xa8] sm:$0xff]
  %v53 = vld [vmem:[%s1 + $0xb0] sm:$0xff]
  %v54 = vld [vmem:[%s1 + $0xb8] sm:$0xff]
  %v55 = vld [vmem:[%s1 + $0xc0] sm:$0xff]
  %v56 = vld [vmem:[%s1 + $0xc8] sm:$0xff]
  %v57 = vld [vmem:[%s1 + $0xd0] sm:$0xff]
  %v58 = vld [vmem:[%s1 + $0xd8] sm:$0xff]
  %v59 = vld [vmem:[%s1 + $0xe0] sm:$0xff]
  %v60 = vld [vmem:[%s1 + $0xe8] sm:$0xff]
  %v61 = vld [vmem:[%s1 + $0xf0] sm:$0xff]
  %v62 = vld [vmem:[%s1 + $0xf8] sm:$0xff]
  %v63 = vld [vmem:[%s4] sm:$0xff]
  %v64 = vld [vmem:[%s5] sm:$0x1]
  %v66 = vlaneseq
  %v67 = vshrl.u32 %v66, 7
  %v68 = vsub.s32 0, %v67
  %v69 = vrot.slane %v64, %v68
  %vm71 = vcmask 64512
  %v73 = vsel %vm71, %v31, 0
  %v76 = vsel %vm71, %v32, 0
  %v79 = vsel %vm71, %v33, 0
  %v82 = vsel %vm71, %v34, 0
  %v85 = vsel %vm71, %v35, 0
  %v88 = vsel %vm71, %v36, 0
  %v91 = vsel %vm71, %v37, 0
  %v94 = vsel %vm71, %v38, 0
  %v97 = vsel %vm71, %v39, 0
  %v100 = vsel %vm71, %v40, 0
  %v103 = vsel %vm71, %v41, 0
  %v106 = vsel %vm71, %v42, 0
  %v109 = vsel %vm71, %v43, 0
  %v112 = vsel %vm71, %v44, 0
  %v115 = vsel %vm71, %v45, 0
  %v118 = vsel %vm71, %v46, 0
  %v121 = vsel %vm71, %v47, 0
  %v124 = vsel %vm71, %v48, 0
  %v127 = vsel %vm71, %v49, 0
  %v130 = vsel %vm71, %v50, 0
  %v133 = vsel %vm71, %v51, 0
  %v136 = vsel %vm71, %v52, 0
  %v139 = vsel %vm71, %v53, 0
  %v142 = vsel %vm71, %v54, 0
  %v145 = vsel %vm71, %v55, 0
  %v148 = vsel %vm71, %v56, 0
  %v151 = vsel %vm71, %v57, 0
  %v154 = vsel %vm71, %v58, 0
  %v157 = vsel %vm71, %v59, 0
  %v160 = vsel %vm71, %v60, 0
  %v163 = vsel %vm71, %v61, 0
  %v166 = vsel %vm71, %v62, 0
  %168 = vmatprep.subr.mxu0 0.0
  %169 = vmatpush1.msra.mxu0 %v63
  %170 = vmatprep.subr.mxu0 0.0
  %171 = vmatpush1.msra.mxu0 0.0
  %172 = vmatprep.subr.mxu0 0.0
  %173 = vmatpush1.msra.mxu0 0.0
  %174 = vmatprep.subr.mxu0 0.0
  %175 = vmatpush1.msra.mxu0 0.0
  %176 = vmatprep.subr.mxu0 0.0
  %177 = vmatpush1.msra.mxu0 0.0
  %178 = vmatprep.subr.mxu0 0.0
  %179 = vmatpush1.msra.mxu0 0.0
  %180 = vmatprep.subr.mxu0 0.0
  %181 = vmatpush1.msra.mxu0 0.0
  %182 = vmatprep.subr.mxu0 0.0
  %183 = vmatpush1.msra.mxu0 0.0
  %184 = vmatprep.subr.mxu0 0.0
  %185 = vmatpush1.msra.mxu0 0.0
  %186 = vmatprep.subr.mxu0 0.0
  %187 = vmatpush1.msra.mxu0 0.0
  %188 = vmatprep.subr.mxu0 0.0
  %189 = vmatpush1.msra.mxu0 0.0
  %190 = vmatprep.subr.mxu0 0.0
  %191 = vmatpush1.msra.mxu0 0.0
  %192 = vmatprep.subr.mxu0 0.0
  %193 = vmatpush1.msra.mxu0 0.0
  %194 = vmatprep.subr.mxu0 0.0
  %195 = vmatpush1.msra.mxu0 0.0
  %196 = vmatprep.subr.mxu0 0.0
  %197 = vmatpush1.msra.mxu0 0.0
  %198 = vmatprep.subr.mxu0 0.0
  %199 = vmatpush1.msra.mxu0 0.0
  %200 = vmatprep.subr.mxu0 0.0
  %201 = vmatpush1.msra.mxu0 0.0
  %202 = vmatprep.subr.mxu0 0.0
  %203 = vmatpush1.msra.mxu0 0.0
  %204 = vmatprep.subr.mxu0 0.0
  %205 = vmatpush1.msra.mxu0 0.0
  %206 = vmatprep.subr.mxu0 0.0
  %207 = vmatpush1.msra.mxu0 0.0
  %208 = vmatprep.subr.mxu0 0.0
  %209 = vmatpush1.msra.mxu0 0.0
  %210 = vmatprep.subr.mxu0 0.0
  %211 = vmatpush1.msra.mxu0 0.0
  %212 = vmatprep.subr.mxu0 0.0
  %213 = vmatpush1.msra.mxu0 0.0
  %214 = vmatprep.subr.mxu0 0.0
  %215 = vmatpush1.msra.mxu0 0.0
  %216 = vmatprep.subr.mxu0 0.0
  %217 = vmatpush1.msra.mxu0 0.0
  %218 = vmatprep.subr.mxu0 0.0
  %219 = vmatpush1.msra.mxu0 0.0
  %220 = vmatprep.subr.mxu0 0.0
  %221 = vmatpush1.msra.mxu0 0.0
  %222 = vmatprep.subr.mxu0 0.0
  %223 = vmatpush1.msra.mxu0 0.0
  %224 = vmatprep.subr.mxu0 0.0
  %225 = vmatpush1.msra.mxu0 0.0
  %226 = vmatprep.subr.mxu0 0.0
  %227 = vmatpush1.msra.mxu0 0.0
  %228 = vmatprep.subr.mxu0 0.0
  %229 = vmatpush1.msra.mxu0 0.0
  %230 = vmatprep.subr.mxu0 0.0
  %231 = vmatpush1.msra.mxu0 0.0
  %232 = vmatprep.mubr.f32.mxu0 0.0
  %233 = vmatmul.mubr.f32.gmra.mrb[0].mxu0 %v73
  %v234 = vpop.f32.mrb[0].mxu0
  %v235 = vadd.f32 %v69, %v234
  %v236 = vpop.f32.mrb[0].mxu0
  %237 = vmatprep.mubr.f32.mxu0 0.0
  %238 = vmatmul.mubr.f32.gmra.mrb[0].mxu0 %v76
  %v239 = vpop.f32.mrb[0].mxu0
  %v240 = vadd.f32 %v69, %v239
  %v241 = vpop.f32.mrb[0].mxu0
  %242 = vmatprep.mubr.f32.mxu0 0.0
  %243 = vmatmul.mubr.f32.gmra.mrb[0].mxu0 %v79
  %v244 = vpop.f32.mrb[0].mxu0
  %v245 = vadd.f32 %v69, %v244
  %v246 = vpop.f32.mrb[0].mxu0
  %247 = vmatprep.mubr.f32.mxu0 0.0
  %248 = vmatmul.mubr.f32.gmra.mrb[0].mxu0 %v82
  %v249 = vpop.f32.mrb[0].mxu0
  %v250 = vadd.f32 %v69, %v249
  %v251 = vpop.f32.mrb[0].mxu0
  %252 = vmatprep.mubr.f32.mxu0 0.0
  %253 = vmatmul.mubr.f32.gmra.mrb[0].mxu0 %v85
  %v254 = vpop.f32.mrb[0].mxu0
  %v255 = vadd.f32 %v69, %v254
  %v256 = vpop.f32.mrb[0].mxu0
  %257 = vmatprep.mubr.f32.mxu0 0.0
  %258 = vmatmul.mubr.f32.gmra.mrb[0].mxu0 %v88
  %v259 = vpop.f32.mrb[0].mxu0
  %v260 = vadd.f32 %v69, %v259
  %v261 = vpop.f32.mrb[0].mxu0
  %262 = vmatprep.mubr.f32.mxu0 0.0
  %263 = vmatmul.mubr.f32.gmra.mrb[0].mxu0 %v91
  %v264 = vpop.f32.mrb[0].mxu0
  %v265 = vadd.f32 %v69, %v264
  %v266 = vpop.f32.mrb[0].mxu0
  %267 = vmatprep.mubr.f32.mxu0 0.0
  %268 = vmatmul.mubr.f32.gmra.mrb[0].mxu0 %v94
  %v269 = vpop.f32.mrb[0].mxu0
  %v270 = vadd.f32 %v69, %v269
  %v271 = vpop.f32.mrb[0].mxu0
  %272 = vmatprep.mubr.f32.mxu0 0.0
  %273 = vmatmul.mubr.f32.gmra.mrb[0].mxu0 %v97
  %v274 = vpop.f32.mrb[0].mxu0
  %v275 = vadd.f32 %v69, %v274
  %v276 = vpop.f32.mrb[0].mxu0
  %277 = vmatprep.mubr.f32.mxu0 0.0
  %278 = vmatmul.mubr.f32.gmra.mrb[0].mxu0 %v100
  %v279 = vpop.f32.mrb[0].mxu0
  %v280 = vadd.f32 %v69, %v279
  %v281 = vpop.f32.mrb[0].mxu0
  %282 = vmatprep.mubr.f32.mxu0 0.0
  %283 = vmatmul.mubr.f32.gmra.mrb[0].mxu0 %v103
  %v284 = vpop.f32.mrb[0].mxu0
  %v285 = vadd.f32 %v69, %v284
  %v286 = vpop.f32.mrb[0].mxu0
  %287 = vmatprep.mubr.f32.mxu0 0.0
  %288 = vmatmul.mubr.f32.gmra.mrb[0].mxu0 %v106
  %v289 = vpop.f32.mrb[0].mxu0
  %v290 = vadd.f32 %v69, %v289
  %v291 = vpop.f32.mrb[0].mxu0
  %292 = vmatprep.mubr.f32.mxu0 0.0
  %293 = vmatmul.mubr.f32.gmra.mrb[0].mxu0 %v109
  %v294 = vpop.f32.mrb[0].mxu0
  %v295 = vadd.f32 %v69, %v294
  %v296 = vpop.f32.mrb[0].mxu0
  %297 = vmatprep.mubr.f32.mxu0 0.0
  %298 = vmatmul.mubr.f32.gmra.mrb[0].mxu0 %v112
  %v299 = vpop.f32.mrb[0].mxu0
  %v300 = vadd.f32 %v69, %v299
  %v301 = vpop.f32.mrb[0].mxu0
  %302 = vmatprep.mubr.f32.mxu0 0.0
  %303 = vmatmul.mubr.f32.gmra.mrb[0].mxu0 %v115
  %v304 = vpop.f32.mrb[0].mxu0
  %v305 = vadd.f32 %v69, %v304
  %v306 = vpop.f32.mrb[0].mxu0
  %307 = vmatprep.mubr.f32.mxu0 0.0
  %308 = vmatmul.mubr.f32.gmra.mrb[0].mxu0 %v118
  %v309 = vpop.f32.mrb[0].mxu0
  %v310 = vadd.f32 %v69, %v309
  %v311 = vpop.f32.mrb[0].mxu0
  %312 = vmatprep.mubr.f32.mxu0 0.0
  %313 = vmatmul.mubr.f32.gmra.mrb[0].mxu0 %v121
  %v314 = vpop.f32.mrb[0].mxu0
  %v315 = vadd.f32 %v69, %v314
  %v316 = vpop.f32.mrb[0].mxu0
  %317 = vmatprep.mubr.f32.mxu0 0.0
  %318 = vmatmul.mubr.f32.gmra.mrb[0].mxu0 %v124
  %v319 = vpop.f32.mrb[0].mxu0
  %v320 = vadd.f32 %v69, %v319
  %v321 = vpop.f32.mrb[0].mxu0
  %322 = vmatprep.mubr.f32.mxu0 0.0
  %323 = vmatmul.mubr.f32.gmra.mrb[0].mxu0 %v127
  %v324 = vpop.f32.mrb[0].mxu0
  %v325 = vadd.f32 %v69, %v324
  %v326 = vpop.f32.mrb[0].mxu0
  %327 = vmatprep.mubr.f32.mxu0 0.0
  %328 = vmatmul.mubr.f32.gmra.mrb[0].mxu0 %v130
  %v329 = vpop.f32.mrb[0].mxu0
  %v330 = vadd.f32 %v69, %v329
  %v331 = vpop.f32.mrb[0].mxu0
  %332 = vmatprep.mubr.f32.mxu0 0.0
  %333 = vmatmul.mubr.f32.gmra.mrb[0].mxu0 %v133
  %v334 = vpop.f32.mrb[0].mxu0
  %v335 = vadd.f32 %v69, %v334
  %v336 = vpop.f32.mrb[0].mxu0
  %337 = vmatprep.mubr.f32.mxu0 0.0
  %338 = vmatmul.mubr.f32.gmra.mrb[0].mxu0 %v136
  %v339 = vpop.f32.mrb[0].mxu0
  %v340 = vadd.f32 %v69, %v339
  %v341 = vpop.f32.mrb[0].mxu0
  %342 = vmatprep.mubr.f32.mxu0 0.0
  %343 = vmatmul.mubr.f32.gmra.mrb[0].mxu0 %v139
  %v344 = vpop.f32.mrb[0].mxu0
  %v345 = vadd.f32 %v69, %v344
  %v346 = vpop.f32.mrb[0].mxu0
  %347 = vmatprep.mubr.f32.mxu0 0.0
  %348 = vmatmul.mubr.f32.gmra.mrb[0].mxu0 %v142
  %v349 = vpop.f32.mrb[0].mxu0
  %v350 = vadd.f32 %v69, %v349
  %v351 = vpop.f32.mrb[0].mxu0
  %352 = vmatprep.mubr.f32.mxu0 0.0
  %353 = vmatmul.mubr.f32.gmra.mrb[0].mxu0 %v145
  %v354 = vpop.f32.mrb[0].mxu0
  %v355 = vadd.f32 %v69, %v354
  %v356 = vpop.f32.mrb[0].mxu0
  %357 = vmatprep.mubr.f32.mxu0 0.0
  %358 = vmatmul.mubr.f32.gmra.mrb[0].mxu0 %v148
  %v359 = vpop.f32.mrb[0].mxu0
  %v360 = vadd.f32 %v69, %v359
  %v361 = vpop.f32.mrb[0].mxu0
  %362 = vmatprep.mubr.f32.mxu0 0.0
  %363 = vmatmul.mubr.f32.gmra.mrb[0].mxu0 %v151
  %v364 = vpop.f32.mrb[0].mxu0
  %v365 = vadd.f32 %v69, %v364
  %v366 = vpop.f32.mrb[0].mxu0
  %367 = vmatprep.mubr.f32.mxu0 0.0
  %368 = vmatmul.mubr.f32.gmra.mrb[0].mxu0 %v154
  %v369 = vpop.f32.mrb[0].mxu0
  %v370 = vadd.f32 %v69, %v369
  %v371 = vpop.f32.mrb[0].mxu0
  %372 = vmatprep.mubr.f32.mxu0 0.0
  %373 = vmatmul.mubr.f32.gmra.mrb[0].mxu0 %v157
  %v374 = vpop.f32.mrb[0].mxu0
  %v375 = vadd.f32 %v69, %v374
  %v376 = vpop.f32.mrb[0].mxu0
  %377 = vmatprep.mubr.f32.mxu0 0.0
  %378 = vmatmul.mubr.f32.gmra.mrb[0].mxu0 %v160
  %v379 = vpop.f32.mrb[0].mxu0
  %v380 = vadd.f32 %v69, %v379
  %v381 = vpop.f32.mrb[0].mxu0
  %382 = vmatprep.mubr.f32.mxu0 0.0
  %383 = vmatmul.mubr.f32.gmra.mrb[0].mxu0 %v163
  %v384 = vpop.f32.mrb[0].mxu0
  %v385 = vadd.f32 %v69, %v384
  %v386 = vpop.f32.mrb[0].mxu0
  %387 = vmatprep.mubr.f32.mxu0 0.0
  %388 = vmatmul.mubr.f32.gmra.mrb[0].mxu0 %v166
  %v389 = vpop.f32.mrb[0].mxu0
  %v390 = vadd.f32 %v69, %v389
  %v391 = vpop.f32.mrb[0].mxu0
  %392 = vdwg.mxu0
  %vm393 = vcmp.gt.f32.partialorder %v235, 0.0
  %vm394 = vcmp.gt.f32.partialorder %v240, 0.0
  %vm395 = vcmp.gt.f32.partialorder %v245, 0.0
  %vm396 = vcmp.gt.f32.partialorder %v250, 0.0
  %vm397 = vcmp.gt.f32.partialorder %v255, 0.0
  %vm398 = vcmp.gt.f32.partialorder %v260, 0.0
  %vm399 = vcmp.gt.f32.partialorder %v265, 0.0
  %vm400 = vcmp.gt.f32.partialorder %v270, 0.0
  %vm401 = vcmp.gt.f32.partialorder %v275, 0.0
  %vm402 = vcmp.gt.f32.partialorder %v280, 0.0
  %vm403 = vcmp.gt.f32.partialorder %v285, 0.0
  %vm404 = vcmp.gt.f32.partialorder %v290, 0.0
  %vm405 = vcmp.gt.f32.partialorder %v295, 0.0
  %vm406 = vcmp.gt.f32.partialorder %v300, 0.0
  %vm407 = vcmp.gt.f32.partialorder %v305, 0.0
  %vm408 = vcmp.gt.f32.partialorder %v310, 0.0
  %vm409 = vcmp.gt.f32.partialorder %v315, 0.0
  %vm410 = vcmp.gt.f32.partialorder %v320, 0.0
  %vm411 = vcmp.gt.f32.partialorder %v325, 0.0
  %vm412 = vcmp.gt.f32.partialorder %v330, 0.0
  %vm413 = vcmp.gt.f32.partialorder %v335, 0.0
  %vm414 = vcmp.gt.f32.partialorder %v340, 0.0
  %vm415 = vcmp.gt.f32.partialorder %v345, 0.0
  %vm416 = vcmp.gt.f32.partialorder %v350, 0.0
  %vm417 = vcmp.gt.f32.partialorder %v355, 0.0
  %vm418 = vcmp.gt.f32.partialorder %v360, 0.0
  %vm419 = vcmp.gt.f32.partialorder %v365, 0.0
  %vm420 = vcmp.gt.f32.partialorder %v370, 0.0
  %vm421 = vcmp.gt.f32.partialorder %v375, 0.0
  %vm422 = vcmp.gt.f32.partialorder %v380, 0.0
  %vm423 = vcmp.gt.f32.partialorder %v385, 0.0
  %vm424 = vcmp.gt.f32.partialorder %v390, 0.0
  %v425 = vmul.f32 %v235, 0.1
  %v426 = vmul.f32 %v240, 0.1
  %v427 = vmul.f32 %v245, 0.1
  %v428 = vmul.f32 %v250, 0.1
  %v429 = vmul.f32 %v255, 0.1
  %v430 = vmul.f32 %v260, 0.1
  %v431 = vmul.f32 %v265, 0.1
  %v432 = vmul.f32 %v270, 0.1
  %v433 = vmul.f32 %v275, 0.1
  %v434 = vmul.f32 %v280, 0.1
  %v435 = vmul.f32 %v285, 0.1
  %v436 = vmul.f32 %v290, 0.1
  %v437 = vmul.f32 %v295, 0.1
  %v438 = vmul.f32 %v300, 0.1
  %v439 = vmul.f32 %v305, 0.1
  %v440 = vmul.f32 %v310, 0.1
  %v441 = vmul.f32 %v315, 0.1
  %v442 = vmul.f32 %v320, 0.1
  %v443 = vmul.f32 %v325, 0.1
  %v444 = vmul.f32 %v330, 0.1
  %v445 = vmul.f32 %v335, 0.1
  %v446 = vmul.f32 %v340, 0.1
  %v447 = vmul.f32 %v345, 0.1
  %v448 = vmul.f32 %v350, 0.1
  %v449 = vmul.f32 %v355, 0.1
  %v450 = vmul.f32 %v360, 0.1
  %v451 = vmul.f32 %v365, 0.1
  %v452 = vmul.f32 %v370, 0.1
  %v453 = vmul.f32 %v375, 0.1
  %v454 = vmul.f32 %v380, 0.1
  %v455 = vmul.f32 %v385, 0.1
  %v456 = vmul.f32 %v390, 0.1
  %v457 = vsel %vm393, %v235, %v425
  %v458 = vsel %vm394, %v240, %v426
  %v459 = vsel %vm395, %v245, %v427
  %v460 = vsel %vm396, %v250, %v428
  %v461 = vsel %vm397, %v255, %v429
  %v462 = vsel %vm398, %v260, %v430
  %v463 = vsel %vm399, %v265, %v431
  %v464 = vsel %vm400, %v270, %v432
  %v465 = vsel %vm401, %v275, %v433
  %v466 = vsel %vm402, %v280, %v434
  %v467 = vsel %vm403, %v285, %v435
  %v468 = vsel %vm404, %v290, %v436
  %v469 = vsel %vm405, %v295, %v437
  %v470 = vsel %vm406, %v300, %v438
  %v471 = vsel %vm407, %v305, %v439
  %v472 = vsel %vm408, %v310, %v440
  %v473 = vsel %vm409, %v315, %v441
  %v474 = vsel %vm410, %v320, %v442
  %v475 = vsel %vm411, %v325, %v443
  %v476 = vsel %vm412, %v330, %v444
  %v477 = vsel %vm413, %v335, %v445
  %v478 = vsel %vm414, %v340, %v446
  %v479 = vsel %vm415, %v345, %v447
  %v480 = vsel %vm416, %v350, %v448
  %v481 = vsel %vm417, %v355, %v449
  %v482 = vsel %vm418, %v360, %v450
  %v483 = vsel %vm419, %v365, %v451
  %v484 = vsel %vm420, %v370, %v452
  %v485 = vsel %vm421, %v375, %v453
  %v486 = vsel %vm422, %v380, %v454
  %v487 = vsel %vm423, %v385, %v455
  %v488 = vsel %vm424, %v390, %v456
  %v489 = vld [vmem:[%s6] sm:$0x1]
  %v491 = vlaneseq
  %v492 = vshrl.u32 %v491, 7
  %v493 = vsub.s32 0, %v492
  %v494 = vrot.slane %v489, %v493
  %v496 = vmul.f32 %v457, %v494
  %v497 = vmul.f32 %v458, %v494
  %v498 = vmul.f32 %v459, %v494
  %v499 = vmul.f32 %v460, %v494
  %v500 = vmul.f32 %v461, %v494
  %v501 = vmul.f32 %v462, %v494
  %v502 = vmul.f32 %v463, %v494
  %v503 = vmul.f32 %v464, %v494
  %v504 = vmul.f32 %v465, %v494
  %v505 = vmul.f32 %v466, %v494
  %v506 = vmul.f32 %v467, %v494
  %v507 = vmul.f32 %v468, %v494
  %v508 = vmul.f32 %v469, %v494
  %v509 = vmul.f32 %v470, %v494
  %v510 = vmul.f32 %v471, %v494
  %v511 = vmul.f32 %v472, %v494
  %v512 = vmul.f32 %v473, %v494
  %v513 = vmul.f32 %v474, %v494
  %v514 = vmul.f32 %v475, %v494
  %v515 = vmul.f32 %v476, %v494
  %v516 = vmul.f32 %v477, %v494
  %v517 = vmul.f32 %v478, %v494
  %v518 = vmul.f32 %v479, %v494
  %v519 = vmul.f32 %v480, %v494
  %v520 = vmul.f32 %v481, %v494
  %v521 = vmul.f32 %v482, %v494
  %v522 = vmul.f32 %v483, %v494
  %v523 = vmul.f32 %v484, %v494
  %v524 = vmul.f32 %v485, %v494
  %v525 = vmul.f32 %v486, %v494
  %v526 = vmul.f32 %v487, %v494
  %v527 = vmul.f32 %v488, %v494
  %vm528 = vcmask 261120
  %v529 = vsel %vm528, %v496, 0.0
  %530 = vadd.xlane.f32.xlu0 %v529
  %v531 = vpop.xlane.xlu0 %530
  %v532 = vsel %vm528, %v497, 0.0
  %533 = vadd.xlane.f32.xlu0 %v532
  %v534 = vpop.xlane.xlu0 %533
  %v535 = vsel %vm528, %v498, 0.0
  %536 = vadd.xlane.f32.xlu0 %v535
  %v537 = vpop.xlane.xlu0 %536
  %v538 = vsel %vm528, %v499, 0.0
  %539 = vadd.xlane.f32.xlu0 %v538
  %v540 = vpop.xlane.xlu0 %539
  %v541 = vsel %vm528, %v500, 0.0
  %542 = vadd.xlane.f32.xlu0 %v541
  %v543 = vpop.xlane.xlu0 %542
  %v544 = vsel %vm528, %v501, 0.0
  %545 = vadd.xlane.f32.xlu0 %v544
  %v546 = vpop.xlane.xlu0 %545
  %v547 = vsel %vm528, %v502, 0.0
  %548 = vadd.xlane.f32.xlu0 %v547
  %v549 = vpop.xlane.xlu0 %548
  %v550 = vsel %vm528, %v503, 0.0
  %551 = vadd.xlane.f32.xlu0 %v550
  %v552 = vpop.xlane.xlu0 %551
  %v553 = vsel %vm528, %v504, 0.0
  %554 = vadd.xlane.f32.xlu0 %v553
  %v555 = vpop.xlane.xlu0 %554
  %v556 = vsel %vm528, %v505, 0.0
  %557 = vadd.xlane.f32.xlu0 %v556
  %v558 = vpop.xlane.xlu0 %557
  %v559 = vsel %vm528, %v506, 0.0
  %560 = vadd.xlane.f32.xlu0 %v559
  %v561 = vpop.xlane.xlu0 %560
  %v562 = vsel %vm528, %v507, 0.0
  %563 = vadd.xlane.f32.xlu0 %v562
  %v564 = vpop.xlane.xlu0 %563
  %v565 = vsel %vm528, %v508, 0.0
  %566 = vadd.xlane.f32.xlu0 %v565
  %v567 = vpop.xlane.xlu0 %566
  %v568 = vsel %vm528, %v509, 0.0
  %569 = vadd.xlane.f32.xlu0 %v568
  %v570 = vpop.xlane.xlu0 %569
  %v571 = vsel %vm528, %v510, 0.0
  %572 = vadd.xlane.f32.xlu0 %v571
  %v573 = vpop.xlane.xlu0 %572
  %v574 = vsel %vm528, %v511, 0.0
  %575 = vadd.xlane.f32.xlu0 %v574
  %v576 = vpop.xlane.xlu0 %575
  %v577 = vsel %vm528, %v512, 0.0
  %578 = vadd.xlane.f32.xlu0 %v577
  %v579 = vpop.xlane.xlu0 %578
  %v580 = vsel %vm528, %v513, 0.0
  %581 = vadd.xlane.f32.xlu0 %v580
  %v582 = vpop.xlane.xlu0 %581
  %v583 = vsel %vm528, %v514, 0.0
  %584 = vadd.xlane.f32.xlu0 %v583
  %v585 = vpop.xlane.xlu0 %584
  %v586 = vsel %vm528, %v515, 0.0
  %587 = vadd.xlane.f32.xlu0 %v586
  %v588 = vpop.xlane.xlu0 %587
  %v589 = vsel %vm528, %v516, 0.0
  %590 = vadd.xlane.f32.xlu0 %v589
  %v591 = vpop.xlane.xlu0 %590
  %v592 = vsel %vm528, %v517, 0.0
  %593 = vadd.xlane.f32.xlu0 %v592
  %v594 = vpop.xlane.xlu0 %593
  %v595 = vsel %vm528, %v518, 0.0
  %596 = vadd.xlane.f32.xlu0 %v595
  %v597 = vpop.xlane.xlu0 %596
  %v598 = vsel %vm528, %v519, 0.0
  %599 = vadd.xlane.f32.xlu0 %v598
  %v600 = vpop.xlane.xlu0 %599
  %v601 = vsel %vm528, %v520, 0.0
  %602 = vadd.xlane.f32.xlu0 %v601
  %v603 = vpop.xlane.xlu0 %602
  %v604 = vsel %vm528, %v521, 0.0
  %605 = vadd.xlane.f32.xlu0 %v604
  %v606 = vpop.xlane.xlu0 %605
  %v607 = vsel %vm528, %v522, 0.0
  %608 = vadd.xlane.f32.xlu0 %v607
  %v609 = vpop.xlane.xlu0 %608
  %v610 = vsel %vm528, %v523, 0.0
  %611 = vadd.xlane.f32.xlu0 %v610
  %v612 = vpop.xlane.xlu0 %611
  %v613 = vsel %vm528, %v524, 0.0
  %614 = vadd.xlane.f32.xlu0 %v613
  %v615 = vpop.xlane.xlu0 %614
  %v616 = vsel %vm528, %v525, 0.0
  %617 = vadd.xlane.f32.xlu0 %v616
  %v618 = vpop.xlane.xlu0 %617
  %v619 = vsel %vm528, %v526, 0.0
  %620 = vadd.xlane.f32.xlu0 %v619
  %v621 = vpop.xlane.xlu0 %620
  %v622 = vsel %vm528, %v527, 0.0
  %623 = vadd.xlane.f32.xlu0 %v622
  %v624 = vpop.xlane.xlu0 %623
  %v625 = vld [vmem:[#allocation2] sm:$0x1]
  %v627 = vlaneseq
  %v628 = vshrl.u32 %v627, 7
  %v629 = vsub.s32 0, %v628
  %v630 = vrot.slane %v625, %v629
  %v632 = vadd.f32 %v531, %v630
  %v633 = vadd.f32 %v534, %v630
  %v634 = vadd.f32 %v537, %v630
  %v635 = vadd.f32 %v540, %v630
  %v636 = vadd.f32 %v543, %v630
  %v637 = vadd.f32 %v546, %v630
  %v638 = vadd.f32 %v549, %v630
  %v639 = vadd.f32 %v552, %v630
  %v640 = vadd.f32 %v555, %v630
  %v641 = vadd.f32 %v558, %v630
  %v642 = vadd.f32 %v561, %v630
  %v643 = vadd.f32 %v564, %v630
  %v644 = vadd.f32 %v567, %v630
  %v645 = vadd.f32 %v570, %v630
  %v646 = vadd.f32 %v573, %v630
  %v647 = vadd.f32 %v576, %v630
  %v648 = vadd.f32 %v579, %v630
  %v649 = vadd.f32 %v582, %v630
  %v650 = vadd.f32 %v585, %v630
  %v651 = vadd.f32 %v588, %v630
  %v652 = vadd.f32 %v591, %v630
  %v653 = vadd.f32 %v594, %v630
  %v654 = vadd.f32 %v597, %v630
  %v655 = vadd.f32 %v600, %v630
  %v656 = vadd.f32 %v603, %v630
  %v657 = vadd.f32 %v606, %v630
  %v658 = vadd.f32 %v609, %v630
  %v659 = vadd.f32 %v612, %v630
  %v660 = vadd.f32 %v615, %v630
  %v661 = vadd.f32 %v618, %v630
  %v662 = vadd.f32 %v621, %v630
  %v663 = vadd.f32 %v624, %v630
  %v664 = vld [vmem:[%s0] sm:$0xff]
  %v665 = vld [vmem:[%s0 + $0x8] sm:$0xff]
  %v668 = vlaneseq
  %v669 = vshrl.u32 %v668, 7
  %v670 = vsub.s32 0, %v669
  %v671 = vrot.slane %v664, %v670
  %673 = vbcast.lane.b32.xlu0 %v671, 256
  %v674 = vpop.permute.xlu0 %673
  %s676 = sor.u32 256, 8
  %677 = vbcast.lane.b32.xlu0 %v671, %s676
  %v678 = vpop.permute.xlu0 %677
  %v679 = vlaneseq
  %v680 = vshrl.u32 %v679, 7
  %v681 = vsub.s32 1, %v680
  %v682 = vrot.slane %v664, %v681
  %684 = vbcast.lane.b32.xlu0 %v682, 256
  %v685 = vpop.permute.xlu0 %684
  %s687 = sor.u32 256, 8
  %688 = vbcast.lane.b32.xlu0 %v682, %s687
  %v689 = vpop.permute.xlu0 %688
  %v690 = vlaneseq
  %v691 = vshrl.u32 %v690, 7
  %v692 = vsub.s32 2, %v691
  %v693 = vrot.slane %v664, %v692
  %695 = vbcast.lane.b32.xlu0 %v693, 256
  %v696 = vpop.permute.xlu0 %695
  %s698 = sor.u32 256, 8
  %699 = vbcast.lane.b32.xlu0 %v693, %s698
  %v700 = vpop.permute.xlu0 %699
  %v701 = vlaneseq
  %v702 = vshrl.u32 %v701, 7
  %v703 = vsub.s32 3, %v702
  %v704 = vrot.slane %v664, %v703
  %706 = vbcast.lane.b32.xlu0 %v704, 256
  %v707 = vpop.permute.xlu0 %706
  %s709 = sor.u32 256, 8
  %710 = vbcast.lane.b32.xlu0 %v704, %s709
  %v711 = vpop.permute.xlu0 %710
  %v712 = vlaneseq
  %v713 = vshrl.u32 %v712, 7
  %v714 = vsub.s32 4, %v713
  %v715 = vrot.slane %v664, %v714
  %717 = vbcast.lane.b32.xlu0 %v715, 256
  %v718 = vpop.permute.xlu0 %717
  %s720 = sor.u32 256, 8
  %721 = vbcast.lane.b32.xlu0 %v715, %s720
  %v722 = vpop.permute.xlu0 %721
  %v723 = vlaneseq
  %v724 = vshrl.u32 %v723, 7
  %v725 = vsub.s32 5, %v724
  %v726 = vrot.slane %v664, %v725
  %728 = vbcast.lane.b32.xlu0 %v726, 256
  %v729 = vpop.permute.xlu0 %728
  %s731 = sor.u32 256, 8
  %732 = vbcast.lane.b32.xlu0 %v726, %s731
  %v733 = vpop.permute.xlu0 %732
  %v734 = vlaneseq
  %v735 = vshrl.u32 %v734, 7
  %v736 = vsub.s32 6, %v735
  %v737 = vrot.slane %v664, %v736
  %739 = vbcast.lane.b32.xlu0 %v737, 256
  %v740 = vpop.permute.xlu0 %739
  %s742 = sor.u32 256, 8
  %743 = vbcast.lane.b32.xlu0 %v737, %s742
  %v744 = vpop.permute.xlu0 %743
  %v745 = vlaneseq
  %v746 = vshrl.u32 %v745, 7
  %v747 = vsub.s32 7, %v746
  %v748 = vrot.slane %v664, %v747
  %750 = vbcast.lane.b32.xlu0 %v748, 256
  %v751 = vpop.permute.xlu0 %750
  %s753 = sor.u32 256, 8
  %754 = vbcast.lane.b32.xlu0 %v748, %s753
  %v755 = vpop.permute.xlu0 %754
  %v756 = vlaneseq
  %v757 = vshrl.u32 %v756, 7
  %v758 = vsub.s32 0, %v757
  %v759 = vrot.slane %v665, %v758
  %761 = vbcast.lane.b32.xlu0 %v759, 256
  %v762 = vpop.permute.xlu0 %761
  %s764 = sor.u32 256, 8
  %765 = vbcast.lane.b32.xlu0 %v759, %s764
  %v766 = vpop.permute.xlu0 %765
  %v767 = vlaneseq
  %v768 = vshrl.u32 %v767, 7
  %v769 = vsub.s32 1, %v768
  %v770 = vrot.slane %v665, %v769
  %772 = vbcast.lane.b32.xlu0 %v770, 256
  %v773 = vpop.permute.xlu0 %772
  %s775 = sor.u32 256, 8
  %776 = vbcast.lane.b32.xlu0 %v770, %s775
  %v777 = vpop.permute.xlu0 %776
  %v778 = vlaneseq
  %v779 = vshrl.u32 %v778, 7
  %v780 = vsub.s32 2, %v779
  %v781 = vrot.slane %v665, %v780
  %783 = vbcast.lane.b32.xlu0 %v781, 256
  %v784 = vpop.permute.xlu0 %783
  %s786 = sor.u32 256, 8
  %787 = vbcast.lane.b32.xlu0 %v781, %s786
  %v788 = vpop.permute.xlu0 %787
  %v789 = vlaneseq
  %v790 = vshrl.u32 %v789, 7
  %v791 = vsub.s32 3, %v790
  %v792 = vrot.slane %v665, %v791
  %794 = vbcast.lane.b32.xlu0 %v792, 256
  %v795 = vpop.permute.xlu0 %794
  %s797 = sor.u32 256, 8
  %798 = vbcast.lane.b32.xlu0 %v792, %s797
  %v799 = vpop.permute.xlu0 %798
  %v800 = vlaneseq
  %v801 = vshrl.u32 %v800, 7
  %v802 = vsub.s32 4, %v801
  %v803 = vrot.slane %v665, %v802
  %805 = vbcast.lane.b32.xlu0 %v803, 256
  %v806 = vpop.permute.xlu0 %805
  %s808 = sor.u32 256, 8
  %809 = vbcast.lane.b32.xlu0 %v803, %s808
  %v810 = vpop.permute.xlu0 %809
  %v811 = vlaneseq
  %v812 = vshrl.u32 %v811, 7
  %v813 = vsub.s32 5, %v812
  %v814 = vrot.slane %v665, %v813
  %816 = vbcast.lane.b32.xlu0 %v814, 256
  %v817 = vpop.permute.xlu0 %816
  %s819 = sor.u32 256, 8
  %820 = vbcast.lane.b32.xlu0 %v814, %s819
  %v821 = vpop.permute.xlu0 %820
  %v822 = vlaneseq
  %v823 = vshrl.u32 %v822, 7
  %v824 = vsub.s32 6, %v823
  %v825 = vrot.slane %v665, %v824
  %827 = vbcast.lane.b32.xlu0 %v825, 256
  %v828 = vpop.permute.xlu0 %827
  %s830 = sor.u32 256, 8
  %831 = vbcast.lane.b32.xlu0 %v825, %s830
  %v832 = vpop.permute.xlu0 %831
  %v833 = vlaneseq
  %v834 = vshrl.u32 %v833, 7
  %v835 = vsub.s32 7, %v834
  %v836 = vrot.slane %v665, %v835
  %838 = vbcast.lane.b32.xlu0 %v836, 256
  %v839 = vpop.permute.xlu0 %838
  %s841 = sor.u32 256, 8
  %842 = vbcast.lane.b32.xlu0 %v836, %s841
  %v843 = vpop.permute.xlu0 %842
  %v876 = vmul.f32 %v632, %v674
  %v877 = vmul.f32 %v633, %v678
  %v878 = vmul.f32 %v634, %v685
  %v879 = vmul.f32 %v635, %v689
  %v880 = vmul.f32 %v636, %v696
  %v881 = vmul.f32 %v637, %v700
  %v882 = vmul.f32 %v638, %v707
  %v883 = vmul.f32 %v639, %v711
  %v884 = vmul.f32 %v640, %v718
  %v885 = vmul.f32 %v641, %v722
  %v886 = vmul.f32 %v642, %v729
  %v887 = vmul.f32 %v643, %v733
  %v888 = vmul.f32 %v644, %v740
  %v889 = vmul.f32 %v645, %v744
  %v890 = vmul.f32 %v646, %v751
  %v891 = vmul.f32 %v647, %v755
  %v892 = vmul.f32 %v648, %v762
  %v893 = vmul.f32 %v649, %v766
  %v894 = vmul.f32 %v650, %v773
  %v895 = vmul.f32 %v651, %v777
  %v896 = vmul.f32 %v652, %v784
  %v897 = vmul.f32 %v653, %v788
  %v898 = vmul.f32 %v654, %v795
  %v899 = vmul.f32 %v655, %v799
  %v900 = vmul.f32 %v656, %v806
  %v901 = vmul.f32 %v657, %v810
  %v902 = vmul.f32 %v658, %v817
  %v903 = vmul.f32 %v659, %v821
  %v904 = vmul.f32 %v660, %v828
  %v905 = vmul.f32 %v661, %v832
  %v906 = vmul.f32 %v662, %v839
  %v907 = vmul.f32 %v663, %v843
  %940 = vset.pattern.permute.xlu0 0
  %941 = vperm.xlu0 %940, %v876
  %v942 = vpop.permute.xlu0 %941
  %943 = vset.pattern.permute.xlu0 0
  %944 = vperm.xlu0 %943, %v877
  %v945 = vpop.permute.xlu0 %944
  %946 = vset.pattern.permute.xlu0 0
  %947 = vperm.xlu0 %946, %v878
  %v948 = vpop.permute.xlu0 %947
  %949 = vset.pattern.permute.xlu0 0
  %950 = vperm.xlu0 %949, %v879
  %v951 = vpop.permute.xlu0 %950
  %952 = vset.pattern.permute.xlu0 0
  %953 = vperm.xlu0 %952, %v880
  %v954 = vpop.permute.xlu0 %953
  %955 = vset.pattern.permute.xlu0 0
  %956 = vperm.xlu0 %955, %v881
  %v957 = vpop.permute.xlu0 %956
  %958 = vset.pattern.permute.xlu0 0
  %959 = vperm.xlu0 %958, %v882
  %v960 = vpop.permute.xlu0 %959
  %961 = vset.pattern.permute.xlu0 0
  %962 = vperm.xlu0 %961, %v883
  %v963 = vpop.permute.xlu0 %962
  %964 = vset.pattern.permute.xlu0 0
  %965 = vperm.xlu0 %964, %v884
  %v966 = vpop.permute.xlu0 %965
  %967 = vset.pattern.permute.xlu0 0
  %968 = vperm.xlu0 %967, %v885
  %v969 = vpop.permute.xlu0 %968
  %970 = vset.pattern.permute.xlu0 0
  %971 = vperm.xlu0 %970, %v886
  %v972 = vpop.permute.xlu0 %971
  %973 = vset.pattern.permute.xlu0 0
  %974 = vperm.xlu0 %973, %v887
  %v975 = vpop.permute.xlu0 %974
  %976 = vset.pattern.permute.xlu0 0
  %977 = vperm.xlu0 %976, %v888
  %v978 = vpop.permute.xlu0 %977
  %979 = vset.pattern.permute.xlu0 0
  %980 = vperm.xlu0 %979, %v889
  %v981 = vpop.permute.xlu0 %980
  %982 = vset.pattern.permute.xlu0 0
  %983 = vperm.xlu0 %982, %v890
  %v984 = vpop.permute.xlu0 %983
  %985 = vset.pattern.permute.xlu0 0
  %986 = vperm.xlu0 %985, %v891
  %v987 = vpop.permute.xlu0 %986
  %988 = vset.pattern.permute.xlu0 0
  %989 = vperm.xlu0 %988, %v892
  %v990 = vpop.permute.xlu0 %989
  %991 = vset.pattern.permute.xlu0 0
  %992 = vperm.xlu0 %991, %v893
  %v993 = vpop.permute.xlu0 %992
  %994 = vset.pattern.permute.xlu0 0
  %995 = vperm.xlu0 %994, %v894
  %v996 = vpop.permute.xlu0 %995
  %997 = vset.pattern.permute.xlu0 0
  %998 = vperm.xlu0 %997, %v895
  %v999 = vpop.permute.xlu0 %998
  %1000 = vset.pattern.permute.xlu0 0
  %1001 = vperm.xlu0 %1000, %v896
  %v1002 = vpop.permute.xlu0 %1001
  %1003 = vset.pattern.permute.xlu0 0
  %1004 = vperm.xlu0 %1003, %v897
  %v1005 = vpop.permute.xlu0 %1004
  %1006 = vset.pattern.permute.xlu0 0
  %1007 = vperm.xlu0 %1006, %v898
  %v1008 = vpop.permute.xlu0 %1007
  %1009 = vset.pattern.permute.xlu0 0
  %1010 = vperm.xlu0 %1009, %v899
  %v1011 = vpop.permute.xlu0 %1010
  %1012 = vset.pattern.permute.xlu0 0
  %1013 = vperm.xlu0 %1012, %v900
  %v1014 = vpop.permute.xlu0 %1013
  %1015 = vset.pattern.permute.xlu0 0
  %1016 = vperm.xlu0 %1015, %v901
  %v1017 = vpop.permute.xlu0 %1016
  %1018 = vset.pattern.permute.xlu0 0
  %1019 = vperm.xlu0 %1018, %v902
  %v1020 = vpop.permute.xlu0 %1019
  %1021 = vset.pattern.permute.xlu0 0
  %1022 = vperm.xlu0 %1021, %v903
  %v1023 = vpop.permute.xlu0 %1022
  %1024 = vset.pattern.permute.xlu0 0
  %1025 = vperm.xlu0 %1024, %v904
  %v1026 = vpop.permute.xlu0 %1025
  %1027 = vset.pattern.permute.xlu0 0
  %1028 = vperm.xlu0 %1027, %v905
  %v1029 = vpop.permute.xlu0 %1028
  %1030 = vset.pattern.permute.xlu0 0
  %1031 = vperm.xlu0 %1030, %v906
  %v1032 = vpop.permute.xlu0 %1031
  %1033 = vset.pattern.permute.xlu0 0
  %1034 = vperm.xlu0 %1033, %v907
  %v1035 = vpop.permute.xlu0 %1034
  %v1036 = vlaneseq
  %v1037 = vand.u32 %v1036, 127
  %v1038 = vlaneseq
  %v1039 = vshrl.u32 %v1038, 7
  %v1040 = vsub.s32 %v1037, %v1039
  %v1041 = vrot.slane %v942, %v1040
  %v1042 = vadd.s32 %v1037, 4294967288
  %v1043 = vlaneseq
  %v1044 = vshrl.u32 %v1043, 7
  %v1045 = vsub.s32 %v1042, %v1044
  %v1046 = vrot.slane %v945, %v1045
  %vm1047 = vcmask 130112
  %v1048 = vsel %vm1047, %v1046, %v1041
  %v1049 = vlaneseq
  %v1050 = vshrl.u32 %v1049, 7
  %v1051 = vsub.s32 %v1037, %v1050
  %v1052 = vrot.slane %v948, %v1051
  %v1053 = vlaneseq
  %v1054 = vshrl.u32 %v1053, 7
  %v1055 = vsub.s32 %v1042, %v1054
  %v1056 = vrot.slane %v951, %v1055
  %v1057 = vsel %vm1047, %v1056, %v1052
  %v1058 = vlaneseq
  %v1059 = vshrl.u32 %v1058, 7
  %v1060 = vsub.s32 %v1037, %v1059
  %v1061 = vrot.slane %v954, %v1060
  %v1062 = vlaneseq
  %v1063 = vshrl.u32 %v1062, 7
  %v1064 = vsub.s32 %v1042, %v1063
  %v1065 = vrot.slane %v957, %v1064
  %v1066 = vsel %vm1047, %v1065, %v1061
  %v1067 = vlaneseq
  %v1068 = vshrl.u32 %v1067, 7
  %v1069 = vsub.s32 %v1037, %v1068
  %v1070 = vrot.slane %v960, %v1069
  %v1071 = vlaneseq
  %v1072 = vshrl.u32 %v1071, 7
  %v1073 = vsub.s32 %v1042, %v1072
  %v1074 = vrot.slane %v963, %v1073
  %v1075 = vsel %vm1047, %v1074, %v1070
  %v1076 = vlaneseq
  %v1077 = vshrl.u32 %v1076, 7
  %v1078 = vsub.s32 %v1037, %v1077
  %v1079 = vrot.slane %v966, %v1078
  %v1080 = vlaneseq
  %v1081 = vshrl.u32 %v1080, 7
  %v1082 = vsub.s32 %v1042, %v1081
  %v1083 = vrot.slane %v969, %v1082
  %v1084 = vsel %vm1047, %v1083, %v1079
  %v1085 = vlaneseq
  %v1086 = vshrl.u32 %v1085, 7
  %v1087 = vsub.s32 %v1037, %v1086
  %v1088 = vrot.slane %v972, %v1087
  %v1089 = vlaneseq
  %v1090 = vshrl.u32 %v1089, 7
  %v1091 = vsub.s32 %v1042, %v1090
  %v1092 = vrot.slane %v975, %v1091
  %v1093 = vsel %vm1047, %v1092, %v1088
  %v1094 = vlaneseq
  %v1095 = vshrl.u32 %v1094, 7
  %v1096 = vsub.s32 %v1037, %v1095
  %v1097 = vrot.slane %v978, %v1096
  %v1098 = vlaneseq
  %v1099 = vshrl.u32 %v1098, 7
  %v1100 = vsub.s32 %v1042, %v1099
  %v1101 = vrot.slane %v981, %v1100
  %v1102 = vsel %vm1047, %v1101, %v1097
  %v1103 = vlaneseq
  %v1104 = vshrl.u32 %v1103, 7
  %v1105 = vsub.s32 %v1037, %v1104
  %v1106 = vrot.slane %v984, %v1105
  %v1107 = vlaneseq
  %v1108 = vshrl.u32 %v1107, 7
  %v1109 = vsub.s32 %v1042, %v1108
  %v1110 = vrot.slane %v987, %v1109
  %v1111 = vsel %vm1047, %v1110, %v1106
  %v1112 = vlaneseq
  %v1113 = vshrl.u32 %v1112, 7
  %v1114 = vsub.s32 %v1037, %v1113
  %v1115 = vrot.slane %v990, %v1114
  %v1116 = vlaneseq
  %v1117 = vshrl.u32 %v1116, 7
  %v1118 = vsub.s32 %v1042, %v1117
  %v1119 = vrot.slane %v993, %v1118
  %v1120 = vsel %vm1047, %v1119, %v1115
  %v1121 = vlaneseq
  %v1122 = vshrl.u32 %v1121, 7
  %v1123 = vsub.s32 %v1037, %v1122
  %v1124 = vrot.slane %v996, %v1123
  %v1125 = vlaneseq
  %v1126 = vshrl.u32 %v1125, 7
  %v1127 = vsub.s32 %v1042, %v1126
  %v1128 = vrot.slane %v999, %v1127
  %v1129 = vsel %vm1047, %v1128, %v1124
  %v1130 = vlaneseq
  %v1131 = vshrl.u32 %v1130, 7
  %v1132 = vsub.s32 %v1037, %v1131
  %v1133 = vrot.slane %v1002, %v1132
  %v1134 = vlaneseq
  %v1135 = vshrl.u32 %v1134, 7
  %v1136 = vsub.s32 %v1042, %v1135
  %v1137 = vrot.slane %v1005, %v1136
  %v1138 = vsel %vm1047, %v1137, %v1133
  %v1139 = vlaneseq
  %v1140 = vshrl.u32 %v1139, 7
  %v1141 = vsub.s32 %v1037, %v1140
  %v1142 = vrot.slane %v1008, %v1141
  %v1143 = vlaneseq
  %v1144 = vshrl.u32 %v1143, 7
  %v1145 = vsub.s32 %v1042, %v1144
  %v1146 = vrot.slane %v1011, %v1145
  %v1147 = vsel %vm1047, %v1146, %v1142
  %v1148 = vlaneseq
  %v1149 = vshrl.u32 %v1148, 7
  %v1150 = vsub.s32 %v1037, %v1149
  %v1151 = vrot.slane %v1014, %v1150
  %v1152 = vlaneseq
  %v1153 = vshrl.u32 %v1152, 7
  %v1154 = vsub.s32 %v1042, %v1153
  %v1155 = vrot.slane %v1017, %v1154
  %v1156 = vsel %vm1047, %v1155, %v1151
  %v1157 = vlaneseq
  %v1158 = vshrl.u32 %v1157, 7
  %v1159 = vsub.s32 %v1037, %v1158
  %v1160 = vrot.slane %v1020, %v1159
  %v1161 = vlaneseq
  %v1162 = vshrl.u32 %v1161, 7
  %v1163 = vsub.s32 %v1042, %v1162
  %v1164 = vrot.slane %v1023, %v1163
  %v1165 = vsel %vm1047, %v1164, %v1160
  %v1166 = vlaneseq
  %v1167 = vshrl.u32 %v1166, 7
  %v1168 = vsub.s32 %v1037, %v1167
  %v1169 = vrot.slane %v1026, %v1168
  %v1170 = vlaneseq
  %v1171 = vshrl.u32 %v1170, 7
  %v1172 = vsub.s32 %v1042, %v1171
  %v1173 = vrot.slane %v1029, %v1172
  %v1174 = vsel %vm1047, %v1173, %v1169
  %v1175 = vlaneseq
  %v1176 = vshrl.u32 %v1175, 7
  %v1177 = vsub.s32 %v1037, %v1176
  %v1178 = vrot.slane %v1032, %v1177
  %v1179 = vlaneseq
  %v1180 = vshrl.u32 %v1179, 7
  %v1181 = vsub.s32 %v1042, %v1180
  %v1182 = vrot.slane %v1035, %v1181
  %v1183 = vsel %vm1047, %v1182, %v1178
  %vm1184 = vcmask 1041409
  %v1185 = vsel %vm1184, %v1057, %v1048
  %vm1186 = vcmask 1042434
  %v1187 = vsel %vm1186, %v1066, %v1185
  %vm1188 = vcmask 1043459
  %v1189 = vsel %vm1188, %v1075, %v1187
  %vm1190 = vcmask 1044484
  %v1191 = vsel %vm1190, %v1084, %v1189
  %vm1192 = vcmask 1045509
  %v1193 = vsel %vm1192, %v1093, %v1191
  %vm1194 = vcmask 1046534
  %v1195 = vsel %vm1194, %v1102, %v1193
  %vm1196 = vcmask 1047559
  %v1197 = vsel %vm1196, %v1111, %v1195
  %v1198 = vsel %vm1184, %v1129, %v1120
  %v1199 = vsel %vm1186, %v1138, %v1198
  %v1200 = vsel %vm1188, %v1147, %v1199
  %v1201 = vsel %vm1190, %v1156, %v1200
  %v1202 = vsel %vm1192, %v1165, %v1201
  %v1203 = vsel %vm1194, %v1174, %v1202
  %v1204 = vsel %vm1196, %v1183, %v1203
  %vm1207 = vcmask 130048
  %v1208 = vsel %vm1207, %v1197, -inf
  %1209 = vmax.xlane.f32.xlu0 %v1208
  %v1210 = vpop.xlane.xlu0 %1209
  %v1211 = vsel %vm1207, %v1204, -inf
  %1212 = vmax.xlane.f32.xlu0 %v1211
  %v1213 = vpop.xlane.xlu0 %1212
  %v1216 = vlaneseq
  %v1217 = vshrl.u32 %v1216, 7
  %v1218 = vsub.s32 0, %v1217
  %v1219 = vrot.slane %v1210, %v1218
  %v1220 = vlaneseq
  %v1221 = vshrl.u32 %v1220, 7
  %v1222 = vsub.s32 1, %v1221
  %v1223 = vrot.slane %v1210, %v1222
  %v1224 = vlaneseq
  %v1225 = vshrl.u32 %v1224, 7
  %v1226 = vsub.s32 2, %v1225
  %v1227 = vrot.slane %v1210, %v1226
  %v1228 = vlaneseq
  %v1229 = vshrl.u32 %v1228, 7
  %v1230 = vsub.s32 3, %v1229
  %v1231 = vrot.slane %v1210, %v1230
  %v1232 = vlaneseq
  %v1233 = vshrl.u32 %v1232, 7
  %v1234 = vsub.s32 4, %v1233
  %v1235 = vrot.slane %v1210, %v1234
  %v1236 = vlaneseq
  %v1237 = vshrl.u32 %v1236, 7
  %v1238 = vsub.s32 5, %v1237
  %v1239 = vrot.slane %v1210, %v1238
  %v1240 = vlaneseq
  %v1241 = vshrl.u32 %v1240, 7
  %v1242 = vsub.s32 6, %v1241
  %v1243 = vrot.slane %v1210, %v1242
  %v1244 = vlaneseq
  %v1245 = vshrl.u32 %v1244, 7
  %v1246 = vsub.s32 7, %v1245
  %v1247 = vrot.slane %v1210, %v1246
  %v1248 = vlaneseq
  %v1249 = vshrl.u32 %v1248, 7
  %v1250 = vsub.s32 0, %v1249
  %v1251 = vrot.slane %v1213, %v1250
  %v1252 = vlaneseq
  %v1253 = vshrl.u32 %v1252, 7
  %v1254 = vsub.s32 1, %v1253
  %v1255 = vrot.slane %v1213, %v1254
  %v1256 = vlaneseq
  %v1257 = vshrl.u32 %v1256, 7
  %v1258 = vsub.s32 2, %v1257
  %v1259 = vrot.slane %v1213, %v1258
  %v1260 = vlaneseq
  %v1261 = vshrl.u32 %v1260, 7
  %v1262 = vsub.s32 3, %v1261
  %v1263 = vrot.slane %v1213, %v1262
  %v1264 = vlaneseq
  %v1265 = vshrl.u32 %v1264, 7
  %v1266 = vsub.s32 4, %v1265
  %v1267 = vrot.slane %v1213, %v1266
  %v1268 = vlaneseq
  %v1269 = vshrl.u32 %v1268, 7
  %v1270 = vsub.s32 5, %v1269
  %v1271 = vrot.slane %v1213, %v1270
  %v1272 = vlaneseq
  %v1273 = vshrl.u32 %v1272, 7
  %v1274 = vsub.s32 6, %v1273
  %v1275 = vrot.slane %v1213, %v1274
  %v1276 = vlaneseq
  %v1277 = vshrl.u32 %v1276, 7
  %v1278 = vsub.s32 7, %v1277
  %v1279 = vrot.slane %v1213, %v1278
  %v1296 = vsub.f32 %v876, %v1219
  %v1297 = vsub.f32 %v877, %v1219
  %v1298 = vsub.f32 %v878, %v1223
  %v1299 = vsub.f32 %v879, %v1223
  %v1300 = vsub.f32 %v880, %v1227
  %v1301 = vsub.f32 %v881, %v1227
  %v1302 = vsub.f32 %v882, %v1231
  %v1303 = vsub.f32 %v883, %v1231
  %v1304 = vsub.f32 %v884, %v1235
  %v1305 = vsub.f32 %v885, %v1235
  %v1306 = vsub.f32 %v886, %v1239
  %v1307 = vsub.f32 %v887, %v1239
  %v1308 = vsub.f32 %v888, %v1243
  %v1309 = vsub.f32 %v889, %v1243
  %v1310 = vsub.f32 %v890, %v1247
  %v1311 = vsub.f32 %v891, %v1247
  %v1312 = vsub.f32 %v892, %v1251
  %v1313 = vsub.f32 %v893, %v1251
  %v1314 = vsub.f32 %v894, %v1255
  %v1315 = vsub.f32 %v895, %v1255
  %v1316 = vsub.f32 %v896, %v1259
  %v1317 = vsub.f32 %v897, %v1259
  %v1318 = vsub.f32 %v898, %v1263
  %v1319 = vsub.f32 %v899, %v1263
  %v1320 = vsub.f32 %v900, %v1267
  %v1321 = vsub.f32 %v901, %v1267
  %v1322 = vsub.f32 %v902, %v1271
  %v1323 = vsub.f32 %v903, %v1271
  %v1324 = vsub.f32 %v904, %v1275
  %v1325 = vsub.f32 %v905, %v1275
  %v1326 = vsub.f32 %v906, %v1279
  %v1327 = vsub.f32 %v907, %v1279
  %v1328 = vmul.f32 %v1296, 1.442695
  %v1329 = vpow.pop %v1328
  %v1330 = vmul.f32 %v1297, 1.442695
  %v1331 = vpow.pop %v1330
  %v1332 = vmul.f32 %v1298, 1.442695
  %v1333 = vpow.pop %v1332
  %v1334 = vmul.f32 %v1299, 1.442695
  %v1335 = vpow.pop %v1334
  %v1336 = vmul.f32 %v1300, 1.442695
  %v1337 = vpow.pop %v1336
  %v1338 = vmul.f32 %v1301, 1.442695
  %v1339 = vpow.pop %v1338
  %v1340 = vmul.f32 %v1302, 1.442695
  %v1341 = vpow.pop %v1340
  %v1342 = vmul.f32 %v1303, 1.442695
  %v1343 = vpow.pop %v1342
  %v1344 = vmul.f32 %v1304, 1.442695
  %v1345 = vpow.pop %v1344
  %v1346 = vmul.f32 %v1305, 1.442695
  %v1347 = vpow.pop %v1346
  %v1348 = vmul.f32 %v1306, 1.442695
  %v1349 = vpow.pop %v1348
  %v1350 = vmul.f32 %v1307, 1.442695
  %v1351 = vpow.pop %v1350
  %v1352 = vmul.f32 %v1308, 1.442695
  %v1353 = vpow.pop %v1352
  %v1354 = vmul.f32 %v1309, 1.442695
  %v1355 = vpow.pop %v1354
  %v1356 = vmul.f32 %v1310, 1.442695
  %v1357 = vpow.pop %v1356
  %v1358 = vmul.f32 %v1311, 1.442695
  %v1359 = vpow.pop %v1358
  %v1360 = vmul.f32 %v1312, 1.442695
  %v1361 = vpow.pop %v1360
  %v1362 = vmul.f32 %v1313, 1.442695
  %v1363 = vpow.pop %v1362
  %v1364 = vmul.f32 %v1314, 1.442695
  %v1365 = vpow.pop %v1364
  %v1366 = vmul.f32 %v1315, 1.442695
  %v1367 = vpow.pop %v1366
  %v1368 = vmul.f32 %v1316, 1.442695
  %v1369 = vpow.pop %v1368
  %v1370 = vmul.f32 %v1317, 1.442695
  %v1371 = vpow.pop %v1370
  %v1372 = vmul.f32 %v1318, 1.442695
  %v1373 = vpow.pop %v1372
  %v1374 = vmul.f32 %v1319, 1.442695
  %v1375 = vpow.pop %v1374
  %v1376 = vmul.f32 %v1320, 1.442695
  %v1377 = vpow.pop %v1376
  %v1378 = vmul.f32 %v1321, 1.442695
  %v1379 = vpow.pop %v1378
  %v1380 = vmul.f32 %v1322, 1.442695
  %v1381 = vpow.pop %v1380
  %v1382 = vmul.f32 %v1323, 1.442695
  %v1383 = vpow.pop %v1382
  %v1384 = vmul.f32 %v1324, 1.442695
  %v1385 = vpow.pop %v1384
  %v1386 = vmul.f32 %v1325, 1.442695
  %v1387 = vpow.pop %v1386
  %v1388 = vmul.f32 %v1326, 1.442695
  %v1389 = vpow.pop %v1388
  %v1390 = vmul.f32 %v1327, 1.442695
  %v1391 = vpow.pop %v1390
  %1424 = vset.pattern.permute.xlu0 0
  %1425 = vperm.xlu0 %1424, %v1329
  %v1426 = vpop.permute.xlu0 %1425
  %1427 = vset.pattern.permute.xlu0 0
  %1428 = vperm.xlu0 %1427, %v1331
  %v1429 = vpop.permute.xlu0 %1428
  %1430 = vset.pattern.permute.xlu0 0
  %1431 = vperm.xlu0 %1430, %v1333
  %v1432 = vpop.permute.xlu0 %1431
  %1433 = vset.pattern.permute.xlu0 0
  %1434 = vperm.xlu0 %1433, %v1335
  %v1435 = vpop.permute.xlu0 %1434
  %1436 = vset.pattern.permute.xlu0 0
  %1437 = vperm.xlu0 %1436, %v1337
  %v1438 = vpop.permute.xlu0 %1437
  %1439 = vset.pattern.permute.xlu0 0
  %1440 = vperm.xlu0 %1439, %v1339
  %v1441 = vpop.permute.xlu0 %1440
  %1442 = vset.pattern.permute.xlu0 0
  %1443 = vperm.xlu0 %1442, %v1341
  %v1444 = vpop.permute.xlu0 %1443
  %1445 = vset.pattern.permute.xlu0 0
  %1446 = vperm.xlu0 %1445, %v1343
  %v1447 = vpop.permute.xlu0 %1446
  %1448 = vset.pattern.permute.xlu0 0
  %1449 = vperm.xlu0 %1448, %v1345
  %v1450 = vpop.permute.xlu0 %1449
  %1451 = vset.pattern.permute.xlu0 0
  %1452 = vperm.xlu0 %1451, %v1347
  %v1453 = vpop.permute.xlu0 %1452
  %1454 = vset.pattern.permute.xlu0 0
  %1455 = vperm.xlu0 %1454, %v1349
  %v1456 = vpop.permute.xlu0 %1455
  %1457 = vset.pattern.permute.xlu0 0
  %1458 = vperm.xlu0 %1457, %v1351
  %v1459 = vpop.permute.xlu0 %1458
  %1460 = vset.pattern.permute.xlu0 0
  %1461 = vperm.xlu0 %1460, %v1353
  %v1462 = vpop.permute.xlu0 %1461
  %1463 = vset.pattern.permute.xlu0 0
  %1464 = vperm.xlu0 %1463, %v1355
  %v1465 = vpop.permute.xlu0 %1464
  %1466 = vset.pattern.permute.xlu0 0
  %1467 = vperm.xlu0 %1466, %v1357
  %v1468 = vpop.permute.xlu0 %1467
  %1469 = vset.pattern.permute.xlu0 0
  %1470 = vperm.xlu0 %1469, %v1359
  %v1471 = vpop.permute.xlu0 %1470
  %1472 = vset.pattern.permute.xlu0 0
  %1473 = vperm.xlu0 %1472, %v1361
  %v1474 = vpop.permute.xlu0 %1473
  %1475 = vset.pattern.permute.xlu0 0
  %1476 = vperm.xlu0 %1475, %v1363
  %v1477 = vpop.permute.xlu0 %1476
  %1478 = vset.pattern.permute.xlu0 0
  %1479 = vperm.xlu0 %1478, %v1365
  %v1480 = vpop.permute.xlu0 %1479
  %1481 = vset.pattern.permute.xlu0 0
  %1482 = vperm.xlu0 %1481, %v1367
  %v1483 = vpop.permute.xlu0 %1482
  %1484 = vset.pattern.permute.xlu0 0
  %1485 = vperm.xlu0 %1484, %v1369
  %v1486 = vpop.permute.xlu0 %1485
  %1487 = vset.pattern.permute.xlu0 0
  %1488 = vperm.xlu0 %1487, %v1371
  %v1489 = vpop.permute.xlu0 %1488
  %1490 = vset.pattern.permute.xlu0 0
  %1491 = vperm.xlu0 %1490, %v1373
  %v1492 = vpop.permute.xlu0 %1491
  %1493 = vset.pattern.permute.xlu0 0
  %1494 = vperm.xlu0 %1493, %v1375
  %v1495 = vpop.permute.xlu0 %1494
  %1496 = vset.pattern.permute.xlu0 0
  %1497 = vperm.xlu0 %1496, %v1377
  %v1498 = vpop.permute.xlu0 %1497
  %1499 = vset.pattern.permute.xlu0 0
  %1500 = vperm.xlu0 %1499, %v1379
  %v1501 = vpop.permute.xlu0 %1500
  %1502 = vset.pattern.permute.xlu0 0
  %1503 = vperm.xlu0 %1502, %v1381
  %v1504 = vpop.permute.xlu0 %1503
  %1505 = vset.pattern.permute.xlu0 0
  %1506 = vperm.xlu0 %1505, %v1383
  %v1507 = vpop.permute.xlu0 %1506
  %1508 = vset.pattern.permute.xlu0 0
  %1509 = vperm.xlu0 %1508, %v1385
  %v1510 = vpop.permute.xlu0 %1509
  %1511 = vset.pattern.permute.xlu0 0
  %1512 = vperm.xlu0 %1511, %v1387
  %v1513 = vpop.permute.xlu0 %1512
  %1514 = vset.pattern.permute.xlu0 0
  %1515 = vperm.xlu0 %1514, %v1389
  %v1516 = vpop.permute.xlu0 %1515
  %1517 = vset.pattern.permute.xlu0 0
  %1518 = vperm.xlu0 %1517, %v1391
  %v1519 = vpop.permute.xlu0 %1518
  %v1520 = vlaneseq
  %v1521 = vshrl.u32 %v1520, 7
  %v1522 = vsub.s32 %v1037, %v1521
  %v1523 = vrot.slane %v1426, %v1522
  %v1524 = vlaneseq
  %v1525 = vshrl.u32 %v1524, 7
  %v1526 = vsub.s32 %v1042, %v1525
  %v1527 = vrot.slane %v1429, %v1526
  %v1528 = vsel %vm1047, %v1527, %v1523
  %v1529 = vlaneseq
  %v1530 = vshrl.u32 %v1529, 7
  %v1531 = vsub.s32 %v1037, %v1530
  %v1532 = vrot.slane %v1432, %v1531
  %v1533 = vlaneseq
  %v1534 = vshrl.u32 %v1533, 7
  %v1535 = vsub.s32 %v1042, %v1534
  %v1536 = vrot.slane %v1435, %v1535
  %v1537 = vsel %vm1047, %v1536, %v1532
  %v1538 = vlaneseq
  %v1539 = vshrl.u32 %v1538, 7
  %v1540 = vsub.s32 %v1037, %v1539
  %v1541 = vrot.slane %v1438, %v1540
  %v1542 = vlaneseq
  %v1543 = vshrl.u32 %v1542, 7
  %v1544 = vsub.s32 %v1042, %v1543
  %v1545 = vrot.slane %v1441, %v1544
  %v1546 = vsel %vm1047, %v1545, %v1541
  %v1547 = vlaneseq
  %v1548 = vshrl.u32 %v1547, 7
  %v1549 = vsub.s32 %v1037, %v1548
  %v1550 = vrot.slane %v1444, %v1549
  %v1551 = vlaneseq
  %v1552 = vshrl.u32 %v1551, 7
  %v1553 = vsub.s32 %v1042, %v1552
  %v1554 = vrot.slane %v1447, %v1553
  %v1555 = vsel %vm1047, %v1554, %v1550
  %v1556 = vlaneseq
  %v1557 = vshrl.u32 %v1556, 7
  %v1558 = vsub.s32 %v1037, %v1557
  %v1559 = vrot.slane %v1450, %v1558
  %v1560 = vlaneseq
  %v1561 = vshrl.u32 %v1560, 7
  %v1562 = vsub.s32 %v1042, %v1561
  %v1563 = vrot.slane %v1453, %v1562
  %v1564 = vsel %vm1047, %v1563, %v1559
  %v1565 = vlaneseq
  %v1566 = vshrl.u32 %v1565, 7
  %v1567 = vsub.s32 %v1037, %v1566
  %v1568 = vrot.slane %v1456, %v1567
  %v1569 = vlaneseq
  %v1570 = vshrl.u32 %v1569, 7
  %v1571 = vsub.s32 %v1042, %v1570
  %v1572 = vrot.slane %v1459, %v1571
  %v1573 = vsel %vm1047, %v1572, %v1568
  %v1574 = vlaneseq
  %v1575 = vshrl.u32 %v1574, 7
  %v1576 = vsub.s32 %v1037, %v1575
  %v1577 = vrot.slane %v1462, %v1576
  %v1578 = vlaneseq
  %v1579 = vshrl.u32 %v1578, 7
  %v1580 = vsub.s32 %v1042, %v1579
  %v1581 = vrot.slane %v1465, %v1580
  %v1582 = vsel %vm1047, %v1581, %v1577
  %v1583 = vlaneseq
  %v1584 = vshrl.u32 %v1583, 7
  %v1585 = vsub.s32 %v1037, %v1584
  %v1586 = vrot.slane %v1468, %v1585
  %v1587 = vlaneseq
  %v1588 = vshrl.u32 %v1587, 7
  %v1589 = vsub.s32 %v1042, %v1588
  %v1590 = vrot.slane %v1471, %v1589
  %v1591 = vsel %vm1047, %v1590, %v1586
  %v1592 = vlaneseq
  %v1593 = vshrl.u32 %v1592, 7
  %v1594 = vsub.s32 %v1037, %v1593
  %v1595 = vrot.slane %v1474, %v1594
  %v1596 = vlaneseq
  %v1597 = vshrl.u32 %v1596, 7
  %v1598 = vsub.s32 %v1042, %v1597
  %v1599 = vrot.slane %v1477, %v1598
  %v1600 = vsel %vm1047, %v1599, %v1595
  %v1601 = vlaneseq
  %v1602 = vshrl.u32 %v1601, 7
  %v1603 = vsub.s32 %v1037, %v1602
  %v1604 = vrot.slane %v1480, %v1603
  %v1605 = vlaneseq
  %v1606 = vshrl.u32 %v1605, 7
  %v1607 = vsub.s32 %v1042, %v1606
  %v1608 = vrot.slane %v1483, %v1607
  %v1609 = vsel %vm1047, %v1608, %v1604
  %v1610 = vlaneseq
  %v1611 = vshrl.u32 %v1610, 7
  %v1612 = vsub.s32 %v1037, %v1611
  %v1613 = vrot.slane %v1486, %v1612
  %v1614 = vlaneseq
  %v1615 = vshrl.u32 %v1614, 7
  %v1616 = vsub.s32 %v1042, %v1615
  %v1617 = vrot.slane %v1489, %v1616
  %v1618 = vsel %vm1047, %v1617, %v1613
  %v1619 = vlaneseq
  %v1620 = vshrl.u32 %v1619, 7
  %v1621 = vsub.s32 %v1037, %v1620
  %v1622 = vrot.slane %v1492, %v1621
  %v1623 = vlaneseq
  %v1624 = vshrl.u32 %v1623, 7
  %v1625 = vsub.s32 %v1042, %v1624
  %v1626 = vrot.slane %v1495, %v1625
  %v1627 = vsel %vm1047, %v1626, %v1622
  %v1628 = vlaneseq
  %v1629 = vshrl.u32 %v1628, 7
  %v1630 = vsub.s32 %v1037, %v1629
  %v1631 = vrot.slane %v1498, %v1630
  %v1632 = vlaneseq
  %v1633 = vshrl.u32 %v1632, 7
  %v1634 = vsub.s32 %v1042, %v1633
  %v1635 = vrot.slane %v1501, %v1634
  %v1636 = vsel %vm1047, %v1635, %v1631
  %v1637 = vlaneseq
  %v1638 = vshrl.u32 %v1637, 7
  %v1639 = vsub.s32 %v1037, %v1638
  %v1640 = vrot.slane %v1504, %v1639
  %v1641 = vlaneseq
  %v1642 = vshrl.u32 %v1641, 7
  %v1643 = vsub.s32 %v1042, %v1642
  %v1644 = vrot.slane %v1507, %v1643
  %v1645 = vsel %vm1047, %v1644, %v1640
  %v1646 = vlaneseq
  %v1647 = vshrl.u32 %v1646, 7
  %v1648 = vsub.s32 %v1037, %v1647
  %v1649 = vrot.slane %v1510, %v1648
  %v1650 = vlaneseq
  %v1651 = vshrl.u32 %v1650, 7
  %v1652 = vsub.s32 %v1042, %v1651
  %v1653 = vrot.slane %v1513, %v1652
  %v1654 = vsel %vm1047, %v1653, %v1649
  %v1655 = vlaneseq
  %v1656 = vshrl.u32 %v1655, 7
  %v1657 = vsub.s32 %v1037, %v1656
  %v1658 = vrot.slane %v1516, %v1657
  %v1659 = vlaneseq
  %v1660 = vshrl.u32 %v1659, 7
  %v1661 = vsub.s32 %v1042, %v1660
  %v1662 = vrot.slane %v1519, %v1661
  %v1663 = vsel %vm1047, %v1662, %v1658
  %v1664 = vsel %vm1184, %v1537, %v1528
  %v1665 = vsel %vm1186, %v1546, %v1664
  %v1666 = vsel %vm1188, %v1555, %v1665
  %v1667 = vsel %vm1190, %v1564, %v1666
  %v1668 = vsel %vm1192, %v1573, %v1667
  %v1669 = vsel %vm1194, %v1582, %v1668
  %v1670 = vsel %vm1196, %v1591, %v1669
  %v1671 = vsel %vm1184, %v1609, %v1600
  %v1672 = vsel %vm1186, %v1618, %v1671
  %v1673 = vsel %vm1188, %v1627, %v1672
  %v1674 = vsel %vm1190, %v1636, %v1673
  %v1675 = vsel %vm1192, %v1645, %v1674
  %v1676 = vsel %vm1194, %v1654, %v1675
  %v1677 = vsel %vm1196, %v1663, %v1676
  %v1680 = vsel %vm1207, %v1670, 0.0
  %1681 = vadd.xlane.f32.xlu0 %v1680
  %v1682 = vpop.xlane.xlu0 %1681
  %v1683 = vsel %vm1207, %v1677, 0.0
  %1684 = vadd.xlane.f32.xlu0 %v1683
  %v1685 = vpop.xlane.xlu0 %1684
  %v1688 = vlaneseq
  %v1689 = vshrl.u32 %v1688, 7
  %v1690 = vsub.s32 0, %v1689
  %v1691 = vrot.slane %v1682, %v1690
  %v1692 = vlaneseq
  %v1693 = vshrl.u32 %v1692, 7
  %v1694 = vsub.s32 1, %v1693
  %v1695 = vrot.slane %v1682, %v1694
  %v1696 = vlaneseq
  %v1697 = vshrl.u32 %v1696, 7
  %v1698 = vsub.s32 2, %v1697
  %v1699 = vrot.slane %v1682, %v1698
  %v1700 = vlaneseq
  %v1701 = vshrl.u32 %v1700, 7
  %v1702 = vsub.s32 3, %v1701
  %v1703 = vrot.slane %v1682, %v1702
  %v1704 = vlaneseq
  %v1705 = vshrl.u32 %v1704, 7
  %v1706 = vsub.s32 4, %v1705
  %v1707 = vrot.slane %v1682, %v1706
  %v1708 = vlaneseq
  %v1709 = vshrl.u32 %v1708, 7
  %v1710 = vsub.s32 5, %v1709
  %v1711 = vrot.slane %v1682, %v1710
  %v1712 = vlaneseq
  %v1713 = vshrl.u32 %v1712, 7
  %v1714 = vsub.s32 6, %v1713
  %v1715 = vrot.slane %v1682, %v1714
  %v1716 = vlaneseq
  %v1717 = vshrl.u32 %v1716, 7
  %v1718 = vsub.s32 7, %v1717
  %v1719 = vrot.slane %v1682, %v1718
  %v1720 = vlaneseq
  %v1721 = vshrl.u32 %v1720, 7
  %v1722 = vsub.s32 0, %v1721
  %v1723 = vrot.slane %v1685, %v1722
  %v1724 = vlaneseq
  %v1725 = vshrl.u32 %v1724, 7
  %v1726 = vsub.s32 1, %v1725
  %v1727 = vrot.slane %v1685, %v1726
  %v1728 = vlaneseq
  %v1729 = vshrl.u32 %v1728, 7
  %v1730 = vsub.s32 2, %v1729
  %v1731 = vrot.slane %v1685, %v1730
  %v1732 = vlaneseq
  %v1733 = vshrl.u32 %v1732, 7
  %v1734 = vsub.s32 3, %v1733
  %v1735 = vrot.slane %v1685, %v1734
  %v1736 = vlaneseq
  %v1737 = vshrl.u32 %v1736, 7
  %v1738 = vsub.s32 4, %v1737
  %v1739 = vrot.slane %v1685, %v1738
  %v1740 = vlaneseq
  %v1741 = vshrl.u32 %v1740, 7
  %v1742 = vsub.s32 5, %v1741
  %v1743 = vrot.slane %v1685, %v1742
  %v1744 = vlaneseq
  %v1745 = vshrl.u32 %v1744, 7
  %v1746 = vsub.s32 6, %v1745
  %v1747 = vrot.slane %v1685, %v1746
  %v1748 = vlaneseq
  %v1749 = vshrl.u32 %v1748, 7
  %v1750 = vsub.s32 7, %v1749
  %v1751 = vrot.slane %v1685, %v1750
  %v1768 = vrcp.pop %v1691
  %v1769 = vmul.f32 %v1329, %v1768
  %v1770 = vmul.f32 %v1331, %v1768
  %v1771 = vrcp.pop %v1695
  %v1772 = vmul.f32 %v1333, %v1771
  %v1773 = vmul.f32 %v1335, %v1771
  %v1774 = vrcp.pop %v1699
  %v1775 = vmul.f32 %v1337, %v1774
  %v1776 = vmul.f32 %v1339, %v1774
  %v1777 = vrcp.pop %v1703
  %v1778 = vmul.f32 %v1341, %v1777
  %v1779 = vmul.f32 %v1343, %v1777
  %v1780 = vrcp.pop %v1707
  %v1781 = vmul.f32 %v1345, %v1780
  %v1782 = vmul.f32 %v1347, %v1780
  %v1783 = vrcp.pop %v1711
  %v1784 = vmul.f32 %v1349, %v1783
  %v1785 = vmul.f32 %v1351, %v1783
  %v1786 = vrcp.pop %v1715
  %v1787 = vmul.f32 %v1353, %v1786
  %v1788 = vmul.f32 %v1355, %v1786
  %v1789 = vrcp.pop %v1719
  %v1790 = vmul.f32 %v1357, %v1789
  %v1791 = vmul.f32 %v1359, %v1789
  %v1792 = vrcp.pop %v1723
  %v1793 = vmul.f32 %v1361, %v1792
  %v1794 = vmul.f32 %v1363, %v1792
  %v1795 = vrcp.pop %v1727
  %v1796 = vmul.f32 %v1365, %v1795
  %v1797 = vmul.f32 %v1367, %v1795
  %v1798 = vrcp.pop %v1731
  %v1799 = vmul.f32 %v1369, %v1798
  %v1800 = vmul.f32 %v1371, %v1798
  %v1801 = vrcp.pop %v1735
  %v1802 = vmul.f32 %v1373, %v1801
  %v1803 = vmul.f32 %v1375, %v1801
  %v1804 = vrcp.pop %v1739
  %v1805 = vmul.f32 %v1377, %v1804
  %v1806 = vmul.f32 %v1379, %v1804
  %v1807 = vrcp.pop %v1743
  %v1808 = vmul.f32 %v1381, %v1807
  %v1809 = vmul.f32 %v1383, %v1807
  %v1810 = vrcp.pop %v1747
  %v1811 = vmul.f32 %v1385, %v1810
  %v1812 = vmul.f32 %v1387, %v1810
  %v1813 = vrcp.pop %v1751
  %v1814 = vmul.f32 %v1389, %v1813
  %v1815 = vmul.f32 %v1391, %v1813
  %v1816 = vld [vmem:[%s3] sm:$0xff]
  %v1817 = vld [vmem:[%s3 + $0x8] sm:$0xff]
  %v1818 = vld [vmem:[%s3 + $0x10] sm:$0xff]
  %v1819 = vld [vmem:[%s3 + $0x18] sm:$0xff]
  %1836 = vset.pattern.permute.xlu0 0
  %1837 = vperm.xlu0 %1836, %v1769
  %v1838 = vpop.permute.xlu0 %1837
  %1839 = vset.pattern.permute.xlu0 0
  %1840 = vperm.xlu0 %1839, %v1770
  %v1841 = vpop.permute.xlu0 %1840
  %1842 = vset.pattern.permute.xlu0 0
  %1843 = vperm.xlu0 %1842, %v1772
  %v1844 = vpop.permute.xlu0 %1843
  %1845 = vset.pattern.permute.xlu0 0
  %1846 = vperm.xlu0 %1845, %v1773
  %v1847 = vpop.permute.xlu0 %1846
  %1848 = vset.pattern.permute.xlu0 0
  %1849 = vperm.xlu0 %1848, %v1775
  %v1850 = vpop.permute.xlu0 %1849
  %1851 = vset.pattern.permute.xlu0 0
  %1852 = vperm.xlu0 %1851, %v1776
  %v1853 = vpop.permute.xlu0 %1852
  %1854 = vset.pattern.permute.xlu0 0
  %1855 = vperm.xlu0 %1854, %v1778
  %v1856 = vpop.permute.xlu0 %1855
  %1857 = vset.pattern.permute.xlu0 0
  %1858 = vperm.xlu0 %1857, %v1779
  %v1859 = vpop.permute.xlu0 %1858
  %1860 = vset.pattern.permute.xlu0 0
  %1861 = vperm.xlu0 %1860, %v1781
  %v1862 = vpop.permute.xlu0 %1861
  %1863 = vset.pattern.permute.xlu0 0
  %1864 = vperm.xlu0 %1863, %v1782
  %v1865 = vpop.permute.xlu0 %1864
  %1866 = vset.pattern.permute.xlu0 0
  %1867 = vperm.xlu0 %1866, %v1784
  %v1868 = vpop.permute.xlu0 %1867
  %1869 = vset.pattern.permute.xlu0 0
  %1870 = vperm.xlu0 %1869, %v1785
  %v1871 = vpop.permute.xlu0 %1870
  %1872 = vset.pattern.permute.xlu0 0
  %1873 = vperm.xlu0 %1872, %v1787
  %v1874 = vpop.permute.xlu0 %1873
  %1875 = vset.pattern.permute.xlu0 0
  %1876 = vperm.xlu0 %1875, %v1788
  %v1877 = vpop.permute.xlu0 %1876
  %1878 = vset.pattern.permute.xlu0 0
  %1879 = vperm.xlu0 %1878, %v1790
  %v1880 = vpop.permute.xlu0 %1879
  %1881 = vset.pattern.permute.xlu0 0
  %1882 = vperm.xlu0 %1881, %v1791
  %v1883 = vpop.permute.xlu0 %1882
  %v1884 = vlaneseq
  %v1885 = vshrl.u32 %v1884, 7
  %v1886 = vsub.s32 %v1037, %v1885
  %v1887 = vrot.slane %v1838, %v1886
  %v1888 = vlaneseq
  %v1889 = vshrl.u32 %v1888, 7
  %v1890 = vsub.s32 %v1042, %v1889
  %v1891 = vrot.slane %v1841, %v1890
  %v1892 = vsel %vm1047, %v1891, %v1887
  %v1893 = vlaneseq
  %v1894 = vshrl.u32 %v1893, 7
  %v1895 = vsub.s32 %v1037, %v1894
  %v1896 = vrot.slane %v1844, %v1895
  %v1897 = vlaneseq
  %v1898 = vshrl.u32 %v1897, 7
  %v1899 = vsub.s32 %v1042, %v1898
  %v1900 = vrot.slane %v1847, %v1899
  %v1901 = vsel %vm1047, %v1900, %v1896
  %v1902 = vlaneseq
  %v1903 = vshrl.u32 %v1902, 7
  %v1904 = vsub.s32 %v1037, %v1903
  %v1905 = vrot.slane %v1850, %v1904
  %v1906 = vlaneseq
  %v1907 = vshrl.u32 %v1906, 7
  %v1908 = vsub.s32 %v1042, %v1907
  %v1909 = vrot.slane %v1853, %v1908
  %v1910 = vsel %vm1047, %v1909, %v1905
  %v1911 = vlaneseq
  %v1912 = vshrl.u32 %v1911, 7
  %v1913 = vsub.s32 %v1037, %v1912
  %v1914 = vrot.slane %v1856, %v1913
  %v1915 = vlaneseq
  %v1916 = vshrl.u32 %v1915, 7
  %v1917 = vsub.s32 %v1042, %v1916
  %v1918 = vrot.slane %v1859, %v1917
  %v1919 = vsel %vm1047, %v1918, %v1914
  %v1920 = vlaneseq
  %v1921 = vshrl.u32 %v1920, 7
  %v1922 = vsub.s32 %v1037, %v1921
  %v1923 = vrot.slane %v1862, %v1922
  %v1924 = vlaneseq
  %v1925 = vshrl.u32 %v1924, 7
  %v1926 = vsub.s32 %v1042, %v1925
  %v1927 = vrot.slane %v1865, %v1926
  %v1928 = vsel %vm1047, %v1927, %v1923
  %v1929 = vlaneseq
  %v1930 = vshrl.u32 %v1929, 7
  %v1931 = vsub.s32 %v1037, %v1930
  %v1932 = vrot.slane %v1868, %v1931
  %v1933 = vlaneseq
  %v1934 = vshrl.u32 %v1933, 7
  %v1935 = vsub.s32 %v1042, %v1934
  %v1936 = vrot.slane %v1871, %v1935
  %v1937 = vsel %vm1047, %v1936, %v1932
  %v1938 = vlaneseq
  %v1939 = vshrl.u32 %v1938, 7
  %v1940 = vsub.s32 %v1037, %v1939
  %v1941 = vrot.slane %v1874, %v1940
  %v1942 = vlaneseq
  %v1943 = vshrl.u32 %v1942, 7
  %v1944 = vsub.s32 %v1042, %v1943
  %v1945 = vrot.slane %v1877, %v1944
  %v1946 = vsel %vm1047, %v1945, %v1941
  %v1947 = vlaneseq
  %v1948 = vshrl.u32 %v1947, 7
  %v1949 = vsub.s32 %v1037, %v1948
  %v1950 = vrot.slane %v1880, %v1949
  %v1951 = vlaneseq
  %v1952 = vshrl.u32 %v1951, 7
  %v1953 = vsub.s32 %v1042, %v1952
  %v1954 = vrot.slane %v1883, %v1953
  %v1955 = vsel %vm1047, %v1954, %v1950
  %v1956 = vsel %vm1184, %v1901, %v1892
  %v1957 = vsel %vm1186, %v1910, %v1956
  %v1958 = vsel %vm1188, %v1919, %v1957
  %v1959 = vsel %vm1190, %v1928, %v1958
  %v1960 = vsel %vm1192, %v1937, %v1959
  %v1961 = vsel %vm1194, %v1946, %v1960
  %v1962 = vsel %vm1196, %v1955, %v1961
  %v1963 = vsel %vm1207, %v1962, 0
  %1965 = vmatprep.subr.mxu0 0.0
  %1966 = vmatpush1.msra.mxu0 %v1816
  %1967 = vmatprep.subr.mxu0 0.0
  %1968 = vmatpush1.msra.mxu0 %v1817
  %1969 = vmatprep.subr.mxu0 0.0
  %1970 = vmatpush1.msra.mxu0 0.0
  %1971 = vmatprep.subr.mxu0 0.0
  %1972 = vmatpush1.msra.mxu0 0.0
  %1973 = vmatprep.subr.mxu0 0.0
  %1974 = vmatpush1.msra.mxu0 0.0
  %1975 = vmatprep.subr.mxu0 0.0
  %1976 = vmatpush1.msra.mxu0 0.0
  %1977 = vmatprep.subr.mxu0 0.0
  %1978 = vmatpush1.msra.mxu0 0.0
  %1979 = vmatprep.subr.mxu0 0.0
  %1980 = vmatpush1.msra.mxu0 0.0
  %1981 = vmatprep.subr.mxu0 0.0
  %1982 = vmatpush1.msra.mxu0 0.0
  %1983 = vmatprep.subr.mxu0 0.0
  %1984 = vmatpush1.msra.mxu0 0.0
  %1985 = vmatprep.subr.mxu0 0.0
  %1986 = vmatpush1.msra.mxu0 0.0
  %1987 = vmatprep.subr.mxu0 0.0
  %1988 = vmatpush1.msra.mxu0 0.0
  %1989 = vmatprep.subr.mxu0 0.0
  %1990 = vmatpush1.msra.mxu0 0.0
  %1991 = vmatprep.subr.mxu0 0.0
  %1992 = vmatpush1.msra.mxu0 0.0
  %1993 = vmatprep.subr.mxu0 0.0
  %1994 = vmatpush1.msra.mxu0 0.0
  %1995 = vmatprep.subr.mxu0 0.0
  %1996 = vmatpush1.msra.mxu0 0.0
  %1997 = vmatprep.subr.mxu0 0.0
  %1998 = vmatpush1.msra.mxu0 0.0
  %1999 = vmatprep.subr.mxu0 0.0
  %2000 = vmatpush1.msra.mxu0 0.0
  %2001 = vmatprep.subr.mxu0 0.0
  %2002 = vmatpush1.msra.mxu0 0.0
  %2003 = vmatprep.subr.mxu0 0.0
  %2004 = vmatpush1.msra.mxu0 0.0
  %2005 = vmatprep.subr.mxu0 0.0
  %2006 = vmatpush1.msra.mxu0 0.0
  %2007 = vmatprep.subr.mxu0 0.0
  %2008 = vmatpush1.msra.mxu0 0.0
  %2009 = vmatprep.subr.mxu0 0.0
  %2010 = vmatpush1.msra.mxu0 0.0
  %2011 = vmatprep.subr.mxu0 0.0
  %2012 = vmatpush1.msra.mxu0 0.0
  %2013 = vmatprep.subr.mxu0 0.0
  %2014 = vmatpush1.msra.mxu0 0.0
  %2015 = vmatprep.subr.mxu0 0.0
  %2016 = vmatpush1.msra.mxu0 0.0
  %2017 = vmatprep.subr.mxu0 0.0
  %2018 = vmatpush1.msra.mxu0 0.0
  %2019 = vmatprep.subr.mxu0 0.0
  %2020 = vmatpush1.msra.mxu0 0.0
  %2021 = vmatprep.subr.mxu0 0.0
  %2022 = vmatpush1.msra.mxu0 0.0
  %2023 = vmatprep.subr.mxu0 0.0
  %2024 = vmatpush1.msra.mxu0 0.0
  %2025 = vmatprep.subr.mxu0 0.0
  %2026 = vmatpush1.msra.mxu0 0.0
  %2027 = vmatprep.subr.mxu0 0.0
  %2028 = vmatpush1.msra.mxu0 0.0
  %2029 = vmatprep.mubr.f32.mxu0 0.0
  %2030 = vmatmul.mubr.f32.gmra.mrb[0].mxu0 %v1963
  %v2031 = vpop.f32.mrb[0].mxu0
  %v2032 = vadd.f32 0.0, %v2031
  %v2033 = vpop.f32.mrb[0].mxu0
  %2034 = vdwg.mxu0
  %2051 = vset.pattern.permute.xlu0 0
  %2052 = vperm.xlu0 %2051, %v1793
  %v2053 = vpop.permute.xlu0 %2052
  %2054 = vset.pattern.permute.xlu0 0
  %2055 = vperm.xlu0 %2054, %v1794
  %v2056 = vpop.permute.xlu0 %2055
  %2057 = vset.pattern.permute.xlu0 0
  %2058 = vperm.xlu0 %2057, %v1796
  %v2059 = vpop.permute.xlu0 %2058
  %2060 = vset.pattern.permute.xlu0 0
  %2061 = vperm.xlu0 %2060, %v1797
  %v2062 = vpop.permute.xlu0 %2061
  %2063 = vset.pattern.permute.xlu0 0
  %2064 = vperm.xlu0 %2063, %v1799
  %v2065 = vpop.permute.xlu0 %2064
  %2066 = vset.pattern.permute.xlu0 0
  %2067 = vperm.xlu0 %2066, %v1800
  %v2068 = vpop.permute.xlu0 %2067
  %2069 = vset.pattern.permute.xlu0 0
  %2070 = vperm.xlu0 %2069, %v1802
  %v2071 = vpop.permute.xlu0 %2070
  %2072 = vset.pattern.permute.xlu0 0
  %2073 = vperm.xlu0 %2072, %v1803
  %v2074 = vpop.permute.xlu0 %2073
  %2075 = vset.pattern.permute.xlu0 0
  %2076 = vperm.xlu0 %2075, %v1805
  %v2077 = vpop.permute.xlu0 %2076
  %2078 = vset.pattern.permute.xlu0 0
  %2079 = vperm.xlu0 %2078, %v1806
  %v2080 = vpop.permute.xlu0 %2079
  %2081 = vset.pattern.permute.xlu0 0
  %2082 = vperm.xlu0 %2081, %v1808
  %v2083 = vpop.permute.xlu0 %2082
  %2084 = vset.pattern.permute.xlu0 0
  %2085 = vperm.xlu0 %2084, %v1809
  %v2086 = vpop.permute.xlu0 %2085
  %2087 = vset.pattern.permute.xlu0 0
  %2088 = vperm.xlu0 %2087, %v1811
  %v2089 = vpop.permute.xlu0 %2088
  %2090 = vset.pattern.permute.xlu0 0
  %2091 = vperm.xlu0 %2090, %v1812
  %v2092 = vpop.permute.xlu0 %2091
  %2093 = vset.pattern.permute.xlu0 0
  %2094 = vperm.xlu0 %2093, %v1814
  %v2095 = vpop.permute.xlu0 %2094
  %2096 = vset.pattern.permute.xlu0 0
  %2097 = vperm.xlu0 %2096, %v1815
  %v2098 = vpop.permute.xlu0 %2097
  %v2099 = vlaneseq
  %v2100 = vshrl.u32 %v2099, 7
  %v2101 = vsub.s32 %v1037, %v2100
  %v2102 = vrot.slane %v2053, %v2101
  %v2103 = vlaneseq
  %v2104 = vshrl.u32 %v2103, 7
  %v2105 = vsub.s32 %v1042, %v2104
  %v2106 = vrot.slane %v2056, %v2105
  %v2107 = vsel %vm1047, %v2106, %v2102
  %v2108 = vlaneseq
  %v2109 = vshrl.u32 %v2108, 7
  %v2110 = vsub.s32 %v1037, %v2109
  %v2111 = vrot.slane %v2059, %v2110
  %v2112 = vlaneseq
  %v2113 = vshrl.u32 %v2112, 7
  %v2114 = vsub.s32 %v1042, %v2113
  %v2115 = vrot.slane %v2062, %v2114
  %v2116 = vsel %vm1047, %v2115, %v2111
  %v2117 = vlaneseq
  %v2118 = vshrl.u32 %v2117, 7
  %v2119 = vsub.s32 %v1037, %v2118
  %v2120 = vrot.slane %v2065, %v2119
  %v2121 = vlaneseq
  %v2122 = vshrl.u32 %v2121, 7
  %v2123 = vsub.s32 %v1042, %v2122
  %v2124 = vrot.slane %v2068, %v2123
  %v2125 = vsel %vm1047, %v2124, %v2120
  %v2126 = vlaneseq
  %v2127 = vshrl.u32 %v2126, 7
  %v2128 = vsub.s32 %v1037, %v2127
  %v2129 = vrot.slane %v2071, %v2128
  %v2130 = vlaneseq
  %v2131 = vshrl.u32 %v2130, 7
  %v2132 = vsub.s32 %v1042, %v2131
  %v2133 = vrot.slane %v2074, %v2132
  %v2134 = vsel %vm1047, %v2133, %v2129
  %v2135 = vlaneseq
  %v2136 = vshrl.u32 %v2135, 7
  %v2137 = vsub.s32 %v1037, %v2136
  %v2138 = vrot.slane %v2077, %v2137
  %v2139 = vlaneseq
  %v2140 = vshrl.u32 %v2139, 7
  %v2141 = vsub.s32 %v1042, %v2140
  %v2142 = vrot.slane %v2080, %v2141
  %v2143 = vsel %vm1047, %v2142, %v2138
  %v2144 = vlaneseq
  %v2145 = vshrl.u32 %v2144, 7
  %v2146 = vsub.s32 %v1037, %v2145
  %v2147 = vrot.slane %v2083, %v2146
  %v2148 = vlaneseq
  %v2149 = vshrl.u32 %v2148, 7
  %v2150 = vsub.s32 %v1042, %v2149
  %v2151 = vrot.slane %v2086, %v2150
  %v2152 = vsel %vm1047, %v2151, %v2147
  %v2153 = vlaneseq
  %v2154 = vshrl.u32 %v2153, 7
  %v2155 = vsub.s32 %v1037, %v2154
  %v2156 = vrot.slane %v2089, %v2155
  %v2157 = vlaneseq
  %v2158 = vshrl.u32 %v2157, 7
  %v2159 = vsub.s32 %v1042, %v2158
  %v2160 = vrot.slane %v2092, %v2159
  %v2161 = vsel %vm1047, %v2160, %v2156
  %v2162 = vlaneseq
  %v2163 = vshrl.u32 %v2162, 7
  %v2164 = vsub.s32 %v1037, %v2163
  %v2165 = vrot.slane %v2095, %v2164
  %v2166 = vlaneseq
  %v2167 = vshrl.u32 %v2166, 7
  %v2168 = vsub.s32 %v1042, %v2167
  %v2169 = vrot.slane %v2098, %v2168
  %v2170 = vsel %vm1047, %v2169, %v2165
  %v2171 = vsel %vm1184, %v2116, %v2107
  %v2172 = vsel %vm1186, %v2125, %v2171
  %v2173 = vsel %vm1188, %v2134, %v2172
  %v2174 = vsel %vm1190, %v2143, %v2173
  %v2175 = vsel %vm1192, %v2152, %v2174
  %v2176 = vsel %vm1194, %v2161, %v2175
  %v2177 = vsel %vm1196, %v2170, %v2176
  %v2178 = vsel %vm1207, %v2177, 0
  %2180 = vmatprep.subr.mxu0 0.0
  %2181 = vmatpush1.msra.mxu0 %v1818
  %2182 = vmatprep.subr.mxu0 0.0
  %2183 = vmatpush1.msra.mxu0 %v1819
  %2184 = vmatprep.subr.mxu0 0.0
  %2185 = vmatpush1.msra.mxu0 0.0
  %2186 = vmatprep.subr.mxu0 0.0
  %2187 = vmatpush1.msra.mxu0 0.0
  %2188 = vmatprep.subr.mxu0 0.0
  %2189 = vmatpush1.msra.mxu0 0.0
  %2190 = vmatprep.subr.mxu0 0.0
  %2191 = vmatpush1.msra.mxu0 0.0
  %2192 = vmatprep.subr.mxu0 0.0
  %2193 = vmatpush1.msra.mxu0 0.0
  %2194 = vmatprep.subr.mxu0 0.0
  %2195 = vmatpush1.msra.mxu0 0.0
  %2196 = vmatprep.subr.mxu0 0.0
  %2197 = vmatpush1.msra.mxu0 0.0
  %2198 = vmatprep.subr.mxu0 0.0
  %2199 = vmatpush1.msra.mxu0 0.0
  %2200 = vmatprep.subr.mxu0 0.0
  %2201 = vmatpush1.msra.mxu0 0.0
  %2202 = vmatprep.subr.mxu0 0.0
  %2203 = vmatpush1.msra.mxu0 0.0
  %2204 = vmatprep.subr.mxu0 0.0
  %2205 = vmatpush1.msra.mxu0 0.0
  %2206 = vmatprep.subr.mxu0 0.0
  %2207 = vmatpush1.msra.mxu0 0.0
  %2208 = vmatprep.subr.mxu0 0.0
  %2209 = vmatpush1.msra.mxu0 0.0
  %2210 = vmatprep.subr.mxu0 0.0
  %2211 = vmatpush1.msra.mxu0 0.0
  %2212 = vmatprep.subr.mxu0 0.0
  %2213 = vmatpush1.msra.mxu0 0.0
  %2214 = vmatprep.subr.mxu0 0.0
  %2215 = vmatpush1.msra.mxu0 0.0
  %2216 = vmatprep.subr.mxu0 0.0
  %2217 = vmatpush1.msra.mxu0 0.0
  %2218 = vmatprep.subr.mxu0 0.0
  %2219 = vmatpush1.msra.mxu0 0.0
  %2220 = vmatprep.subr.mxu0 0.0
  %2221 = vmatpush1.msra.mxu0 0.0
  %2222 = vmatprep.subr.mxu0 0.0
  %2223 = vmatpush1.msra.mxu0 0.0
  %2224 = vmatprep.subr.mxu0 0.0
  %2225 = vmatpush1.msra.mxu0 0.0
  %2226 = vmatprep.subr.mxu0 0.0
  %2227 = vmatpush1.msra.mxu0 0.0
  %2228 = vmatprep.subr.mxu0 0.0
  %2229 = vmatpush1.msra.mxu0 0.0
  %2230 = vmatprep.subr.mxu0 0.0
  %2231 = vmatpush1.msra.mxu0 0.0
  %2232 = vmatprep.subr.mxu0 0.0
  %2233 = vmatpush1.msra.mxu0 0.0
  %2234 = vmatprep.subr.mxu0 0.0
  %2235 = vmatpush1.msra.mxu0 0.0
  %2236 = vmatprep.subr.mxu0 0.0
  %2237 = vmatpush1.msra.mxu0 0.0
  %2238 = vmatprep.subr.mxu0 0.0
  %2239 = vmatpush1.msra.mxu0 0.0
  %2240 = vmatprep.subr.mxu0 0.0
  %2241 = vmatpush1.msra.mxu0 0.0
  %2242 = vmatprep.subr.mxu0 0.0
  %2243 = vmatpush1.msra.mxu0 0.0
  %2244 = vmatprep.mubr.f32.mxu0 0.0
  %2245 = vmatmul.mubr.f32.gmra.mrb[0].mxu0 %v2178
  %v2246 = vpop.f32.mrb[0].mxu0
  %v2247 = vadd.f32 0.0, %v2246
  %v2248 = vpop.f32.mrb[0].mxu0
  %2249 = vdwg.mxu0
  %v2250 = vld [vmem:[%s2] sm:$0xff]
  %v2251 = vld [vmem:[%s2 + $0x8] sm:$0xff]
  %2253 = vset.pattern.permute.xlu0 0
  %2254 = vperm.xlu0 %2253, %v2250
  %v2255 = vpop.permute.xlu0 %2254
  %2258 = vset.pattern.permute.xlu0 0
  %2259 = vperm.xlu0 %2258, %v2251
  %v2260 = vpop.permute.xlu0 %2259
  %v2262 = vmul.f32 %v2255, %v2032
  %v2263 = vmul.f32 %v2260, %v2247
  %vm2264 = vcmask 31744
  %2265 = vst.msk [vmem:[%s8] sm:$0xff] %vm2264, %v2262
  %2266 = vst.msk [vmem:[%s8 + $0x8] sm:$0xff] %vm2264, %v2263
  // Predicated region
  $region34: #{tpu_custom_call.1} parent=0 // pred_check
    _
  $region35: #{tpu_custom_call.1} parent=0 // pred_check_branch
    %2268 = sbr.rel (0) target = $region37
  $region36: #{tpu_custom_call.1} parent=0 // pred_region
    _
  $region37: #{tpu_custom_call.1} parent=0 // pred_fallthru
    _
  // Predicated region
  $region38: #{tpu_custom_call.1} parent=0 // pred_check
    _
  $region39: #{tpu_custom_call.1} parent=0 // pred_check_branch
    %2270 = sbr.rel (0) target = $region41
  $region40: #{tpu_custom_call.1} parent=0 // pred_region
    _
  $region41: #{tpu_custom_call.1} parent=0 // pred_fallthru
    _

</llo_original>
